<compile_context>
chip_gen: v7x
topology: tpu7x:2x2x1
jax: 0.10.0
libtpu: 0.0.40
codegen_flags: <defaults>
</compile_context>

<pallas_src>
import jax
import jax.numpy as jnp
from jax.experimental import pallas as pl
from jax.experimental.pallas import tpu as pltpu


KERNEL_SIZES = (3, 4, 5)      # conv1 / conv2 / conv3 time widths
K_MAX = max(KERNEL_SIZES)
OUT_LANES = 128               # lane-dense output width


def _round_up(x, m):
    return (x + m - 1) // m * m


# --------------------------------------------------------------------------- #
# Kernel
# --------------------------------------------------------------------------- #
def _cnn_text_kernel(emb_ref, w_ref, b_ref, mask_ref, fcw_ref, fcb_ref,
                     out_ref, acc_ref):
    """One batch tile.

    emb_ref  : [TB, S_pad, D_pad]    bf16 (zero-padded seq / embed dims)
    w_ref    : [K_MAX, D_pad, C_pad] bf16 (fused conv banks; zero taps / channels)
    b_ref    : [1, C_pad]            f32  (fused conv biases)
    mask_ref : [1, S_pad, C_pad]     f32  (0/1 per-bank validity, 0 for pad chans)
    fcw_ref  : [1, C_pad]            f32  (fc weight row; zero for pad channels)
    fcb_ref  : [1, 1]                f32
    out_ref  : [TB, OUT_LANES]       f32  (logit broadcast across lanes)
    acc_ref  : [TB*S_pad, C_pad]     f32  VMEM scratch accumulator
    """
    TB, S_pad, D_pad = emb_ref.shape
    k_max = w_ref.shape[0]
    C_pad = w_ref.shape[2]
    M = TB * S_pad

    # Single unshifted LHS for every tap (layout-preserving leading-dim collapse).
    x = emb_ref[...].reshape(M, D_pad)                      # bf16

    # Tap 0 initializes the accumulator (no zero-fill pass); taps 1..k-1 accumulate.
    acc_ref[...] = jnp.dot(x, w_ref[0], preferred_element_type=jnp.float32)
    for j in range(1, k_max):
        y = jnp.dot(x, w_ref[j], preferred_element_type=jnp.float32)
        # Time shift by j positions == circular roll of the flat result on the XLU
        # (shift = M - j is identical to jnp.roll(y, -j, axis=0)).  Rows that wrap
        # land at t >= S_pad - j >= valid_len of every bank -> zeroed by mask_ref.
        acc_ref[...] += pltpu.roll(y, shift=M - j, axis=0)

    conv = acc_ref[...].reshape(TB, S_pad, C_pad)           # f32
    # Bias + ReLU, then a single precomputed mask multiply (post-ReLU values are
    # >= 0, so masking invalid positions / pad channels with 0 is exact for max).
    conv = jnp.maximum(conv + b_ref[...], 0.0) * mask_ref[...]
    pooled = jnp.max(conv, axis=1)                          # global max-pool [TB, C_pad]

    # Linear(3C -> 1) as a VPU multiply + lane reduce (pad channels have zero weight).
    logit = jnp.sum(pooled * fcw_ref[...], axis=-1, keepdims=True) + fcb_ref[...]
    out_ref[...] = jnp.broadcast_to(logit, (TB, out_ref.shape[1]))


# --------------------------------------------------------------------------- #
# VMEM policy / tiling
# --------------------------------------------------------------------------- #
def _vmem_limit_bytes():
    """Generation-aware VMEM limit: ~75% of physical VMEM.

    -> 96 MiB on v5e/v6e (128 MiB physical), 48 MiB on v7x (64 MiB per TC)."""
    try:
        cap = int(pltpu.get_tpu_info().vmem_capacity_bytes)
    except Exception:
        cap = 0
    if cap <= 0:
        cap = 64 * 1024 * 1024            # conservative fallback (v7x per-core size)
    return max(32 * 1024 * 1024, min(cap * 3 // 4, 112 * 1024 * 1024))


def _pick_batch_tile(B, S_pad, D_pad, C_pad, k_max, vmem_limit):
    """Largest batch tile (multiple of 8, <= 128) whose full working set fits
    ~75% of the declared VMEM limit."""
    budget = vmem_limit * 3 // 4
    resident = (
        2 * k_max * D_pad * C_pad * 2         # double-buffered bf16 fused weights
        + 2 * S_pad * C_pad * 4               # double-buffered f32 validity mask
        + 4 * C_pad * 4 + 1024                # bias + fc row + fc bias (tiny)
    )
    tb = 128
    while tb > 8:
        per_tile = (
            2 * tb * S_pad * D_pad * 2        # double-buffered bf16 embedding tile
            + tb * S_pad * C_pad * 4          # f32 accumulator scratch
            + 2 * tb * S_pad * C_pad * 4      # live matmul result + rolled copy
            + tb * S_pad * C_pad * 4          # epilogue temporaries (bias/ReLU/mask)
            + 2 * tb * OUT_LANES * 4          # double-buffered output block
        )
        if resident + per_tile <= budget:
            break
        tb //= 2
    # TODO(synk): for very large S*D even tb=8 may exceed the budget; a sequence-
    # chunked grid axis would be the next step for that regime.
    return max(8, min(tb, _round_up(B, 8)))


def _validity_mask(S, S_pad, C, C_pad):
    """[1, S_pad, C_pad] 0/1 f32 mask: position t valid iff t <= S - k(bank) and the
    channel is a real (non-pad) channel."""
    c = jnp.arange(C_pad)
    vlen = jnp.where(c < C, S - KERNEL_SIZES[0] + 1,
           jnp.where(c < 2 * C, S - KERNEL_SIZES[1] + 1,
           jnp.where(c < 3 * C, S - KERNEL_SIZES[2] + 1, 0)))
    t = jnp.arange(S_pad)[:, None]
    return (t < vlen[None, :]).astype(jnp.float32)[None]     # [1, S_pad, C_pad]


# --------------------------------------------------------------------------- #
# Wrapper
# --------------------------------------------------------------------------- #
def fuse_and_pad_params(params):
    """One-time prep: fuse the 3 conv banks, lane-pad, cast MXU operands to bf16."""
    w_list, b_list = [], []
    for k in KERNEL_SIZES:
        w = params[f"w{k}"]                                       # [k, D, C]
        w_list.append(jnp.pad(w, ((0, K_MAX - k), (0, 0), (0, 0))))  # zero taps
        b_list.append(params[f"b{k}"].reshape(1, -1))
    W = jnp.concatenate(w_list, axis=-1)                          # [K_MAX, D, 3C]
    b = jnp.concatenate(b_list, axis=-1)                          # [1, 3C]
    _, D, C_tot = W.shape
    C = C_tot // len(KERNEL_SIZES)
    D_pad = _round_up(D, 128)
    C_pad = _round_up(C_tot, 128)
    W = jnp.pad(W, ((0, 0), (0, D_pad - D), (0, C_pad - C_tot))).astype(jnp.bfloat16)
    b = jnp.pad(b, ((0, 0), (0, C_pad - C_tot))).astype(jnp.float32)
    fc_w = jnp.pad(params["fc_w"].reshape(1, -1),
                   ((0, 0), (0, C_pad - C_tot))).astype(jnp.float32)
    fc_b = params["fc_b"].reshape(1, 1).astype(jnp.float32)
    return {"W": W, "b": b, "fc_w": fc_w, "fc_b": fc_b,
            "kernel_num": int(C), "embed_dim": int(D)}


def cnn_text_clf_forward(embedded, fused, *, batch_tile=None):
    """embedded: [B, S, D] float32.  Returns [B] float32 (matches .view(-1))."""
    B, S, D = embedded.shape
    assert D == fused["embed_dim"]
    W, b, fc_w, fc_b = fused["W"], fused["b"], fused["fc_w"], fused["fc_b"]
    k_max, D_pad, C_pad = W.shape
    C = fused["kernel_num"]

    # Circular-roll tap handling needs no extra K_MAX-1 seq padding: only (8,128)
    # rounding remains in the pre-pass, and pads are skipped entirely when zero.
    S_pad = _round_up(S, 8)

    vmem_limit = _vmem_limit_bytes()
    TB = batch_tile or _pick_batch_tile(B, S_pad, D_pad, C_pad, k_max, vmem_limit)
    # Always >= 2 grid steps so the embedding DMA pipelines with compute and v7x's
    # two TensorCores both get work on the "parallel" batch axis.
    B_pad = max(_round_up(B, TB), 2 * TB)
    grid = (B_pad // TB,)

    # bf16 MXU operand (HBM traffic is bf16 too); zero-pad batch/seq/embed dims
    # only when actually needed (exact: pads never reach a valid output position).
    emb = embedded.astype(jnp.bfloat16)
    if (B_pad - B) or (S_pad - S) or (D_pad - D):
        emb = jnp.pad(emb, ((0, B_pad - B), (0, S_pad - S), (0, D_pad - D)))

    mask = _validity_mask(S, S_pad, C, C_pad)                     # [1, S_pad, C_pad]

    out = pl.pallas_call(
        _cnn_text_kernel,
        out_shape=jax.ShapeDtypeStruct((B_pad, OUT_LANES), jnp.float32),
        grid=grid,
        in_specs=[
            pl.BlockSpec((TB, S_pad, D_pad), lambda i: (i, 0, 0)),     # emb tile
            pl.BlockSpec((k_max, D_pad, C_pad), lambda i: (0, 0, 0)),  # resident W
            pl.BlockSpec((1, C_pad), lambda i: (0, 0)),                # fused bias
            pl.BlockSpec((1, S_pad, C_pad), lambda i: (0, 0, 0)),      # validity mask
            pl.BlockSpec((1, C_pad), lambda i: (0, 0)),                # fc row
            pl.BlockSpec((1, 1), lambda i: (0, 0)),                    # fc bias
        ],
        out_specs=pl.BlockSpec((TB, OUT_LANES), lambda i: (i, 0)),
        scratch_shapes=[pltpu.VMEM((TB * S_pad, C_pad), jnp.float32)],  # f32 acc
        compiler_params=pltpu.CompilerParams(
            dimension_semantics=("parallel",),
            vmem_limit_bytes=vmem_limit),
    )(emb, W, b, mask, fc_w, fc_b)

    # Padded batch rows carry garbage logits (bias -> ReLU); sliced off here.
    # TODO(synk): nn.Dropout is identity in eval mode; training-mode dropout not modeled.
    # TODO(synk): if S < k for a bank, that bank is masked to 0 instead of raising
    # like PyTorch's empty max-pool would.
    return out[:B, 0]


# --------------------------------------------------------------------------- #
# Params + reference
# --------------------------------------------------------------------------- #
def init_params(key, embed_dim, kernel_num):
    """Deterministic synthetic parameters matching the PyTorch module shapes."""
    keys = jax.random.split(key, 8)
    params = {}
    for i, k in enumerate(KERNEL_SIZES):
        w = jax.random.normal(keys[2 * i], (k, embed_dim, kernel_num),
                              dtype=jnp.float32) * 0.1
        bias = jax.random.normal(keys[2 * i + 1], (1, kernel_num),
                                 dtype=jnp.float32) * 0.1
        params[f"w{k}"] = w
        params[f"b{k}"] = bias
    params["fc_w"] = jax.random.normal(
        keys[6], (len(KERNEL_SIZES) * kernel_num, 1), dtype=jnp.float32) * 0.1
    params["fc_b"] = jax.random.normal(keys[7], (1, 1), dtype=jnp.float32) * 0.1
    return params


def reference_forward(embedded, params):
    """Plain-JAX reference with the same bf16 operand quantization as the kernel."""
    emb = embedded.astype(jnp.bfloat16).astype(jnp.float32)
    feats = []
    for k in KERNEL_SIZES:
        w = params[f"w{k}"].astype(jnp.bfloat16).astype(jnp.float32)
        b = params[f"b{k}"]
        L = emb.shape[1] - k + 1
        s = None
        for j in range(k):
            t = jnp.einsum("bld,dc->blc", emb[:, j:j + L, :], w[j])
            s = t if s is None else s + t
        s = jnp.maximum(s + b.reshape(1, 1, -1), 0.0)
        feats.append(jnp.max(s, axis=1))
    x = jnp.concatenate(feats, axis=-1)
    return (x @ params["fc_w"] + params["fc_b"]).reshape(-1)


if __name__ == "__main__":
    # Small shapes consistent with the module's forward:
    batch_size, seq_len, embed_dim, kernel_num = 2, 8, 32, 8

    key = jax.random.PRNGKey(0)
    k_emb, k_par = jax.random.split(key)
    embedded = jax.random.normal(k_emb, (batch_size, seq_len, embed_dim),
                                 dtype=jnp.float32)
    params = init_params(k_par, embed_dim, kernel_num)
    fused = fuse_and_pad_params(params)      # one-time weight fusion / padding / bf16 cast

    out = jax.block_until_ready(cnn_text_clf_forward(embedded, fused))

    ref = jax.block_until_ready(reference_forward(embedded, params))
    assert out.shape == (batch_size,)
    assert jnp.allclose(out, ref, atol=2e-3, rtol=2e-3), (out, ref)

    print("KERNEL_OK")
</pallas_src>

<mosaic_0001>
module attributes {stable_mosaic.version = 11 : i64} {
  func.func @_cnn_text_kernel(%arg0: i32, %arg1: memref<8x8x128xbf16, #tpu.memory_space<vmem>>, %arg2: memref<5x128x128xbf16, #tpu.memory_space<vmem>>, %arg3: memref<1x128xf32, #tpu.memory_space<vmem>>, %arg4: memref<1x8x128xf32, #tpu.memory_space<vmem>>, %arg5: memref<1x128xf32, #tpu.memory_space<vmem>>, %arg6: memref<1x1xf32, #tpu.memory_space<vmem>>, %arg7: memref<8x128xf32, #tpu.memory_space<vmem>>, %arg8: memref<64x128xf32, #tpu.memory_space<vmem>>) attributes {dimension_semantics = [#tpu.dimension_semantics<parallel>], iteration_bounds = array<i64: 2>, scalar_prefetch = 0 : i64, scratch_operands = 1 : i64, tpu.core_type = #tpu.core_type<tc>, window_params = [{transform_indices = @transform_0, window_bounds = array<i64: 8, 8, 128>}, {pipeline_mode = #tpu.pipeline_mode<synchronous>, transform_indices = @transform_1, window_bounds = array<i64: 5, 128, 128>}, {pipeline_mode = #tpu.pipeline_mode<synchronous>, transform_indices = @transform_2, window_bounds = array<i64: 1, 128>}, {pipeline_mode = #tpu.pipeline_mode<synchronous>, transform_indices = @transform_3, window_bounds = array<i64: 1, 8, 128>}, {pipeline_mode = #tpu.pipeline_mode<synchronous>, transform_indices = @transform_4, window_bounds = array<i64: 1, 128>}, {pipeline_mode = #tpu.pipeline_mode<synchronous>, transform_indices = @transform_5, window_bounds = array<i64: 1, 1>}, {transform_indices = @transform_6, window_bounds = array<i64: 8, 128>}]} {
    %c0 = arith.constant 0 : index
    %c0_0 = arith.constant 0 : index
    %c0_1 = arith.constant 0 : index
    %0 = vector.load %arg1[%c0, %c0_0, %c0_1] : memref<8x8x128xbf16, #tpu.memory_space<vmem>>, vector<8x8x128xbf16>
    %1 = vector.shape_cast %0 : vector<8x8x128xbf16> to vector<64x128xbf16>
    %c0_2 = arith.constant 0 : index
    %c0_3 = arith.constant 0 : index
    %c0_4 = arith.constant 0 : index
    %2 = vector.load %arg2[%c0_2, %c0_3, %c0_4] : memref<5x128x128xbf16, #tpu.memory_space<vmem>>, vector<1x128x128xbf16>
    %3 = vector.shape_cast %2 : vector<1x128x128xbf16> to vector<128x128xbf16>
    %cst = arith.constant dense<0.000000e+00> : vector<64x128xf32>
    %4 = tpu.matmul %1, %3, %cst {dimension_numbers = #tpu.dot_dimension_numbers<[1], [0], [0], [1], [0, 0, 1, 1], [], []>} : vector<64x128xbf16>, vector<128x128xbf16>, vector<64x128xf32> -> vector<64x128xf32>
    %c0_5 = arith.constant 0 : index
    %c0_6 = arith.constant 0 : index
    %5 = vector.load %arg8[%c0_5, %c0_6] : memref<64x128xf32, #tpu.memory_space<vmem>>, vector<64x128xf32>
    tpu.vector_store %arg8[%c0_5, %c0_6], %4 {strides = array<i32>} : memref<64x128xf32, #tpu.memory_space<vmem>>, vector<64x128xf32>,
    %c1 = arith.constant 1 : index
    %c0_7 = arith.constant 0 : index
    %c0_8 = arith.constant 0 : index
    %6 = vector.load %arg2[%c1, %c0_7, %c0_8] : memref<5x128x128xbf16, #tpu.memory_space<vmem>>, vector<1x128x128xbf16>
    %7 = vector.shape_cast %6 : vector<1x128x128xbf16> to vector<128x128xbf16>
    %cst_9 = arith.constant dense<0.000000e+00> : vector<64x128xf32>
    %8 = tpu.matmul %1, %7, %cst_9 {dimension_numbers = #tpu.dot_dimension_numbers<[1], [0], [0], [1], [0, 0, 1, 1], [], []>} : vector<64x128xbf16>, vector<128x128xbf16>, vector<64x128xf32> -> vector<64x128xf32>
    %c0_10 = arith.constant 0 : index
    %c0_11 = arith.constant 0 : index
    %9 = vector.load %arg8[%c0_10, %c0_11] : memref<64x128xf32, #tpu.memory_space<vmem>>, vector<64x128xf32>
    %c63_i32 = arith.constant 63 : i32
    %10 = tpu.dynamic_rotate %8 by %c63_i32 dim 0 : vector<64x128xf32>, i32 -> vector<64x128xf32>
    %11 = arith.addf %9, %10 : vector<64x128xf32>
    %c0_12 = arith.constant 0 : index
    %c0_13 = arith.constant 0 : index
    %12 = vector.load %arg8[%c0_12, %c0_13] : memref<64x128xf32, #tpu.memory_space<vmem>>, vector<64x128xf32>
    tpu.vector_store %arg8[%c0_12, %c0_13], %11 {strides = array<i32>} : memref<64x128xf32, #tpu.memory_space<vmem>>, vector<64x128xf32>,
    %c2 = arith.constant 2 : index
    %c0_14 = arith.constant 0 : index
    %c0_15 = arith.constant 0 : index
    %13 = vector.load %arg2[%c2, %c0_14, %c0_15] : memref<5x128x128xbf16, #tpu.memory_space<vmem>>, vector<1x128x128xbf16>
    %14 = vector.shape_cast %13 : vector<1x128x128xbf16> to vector<128x128xbf16>
    %cst_16 = arith.constant dense<0.000000e+00> : vector<64x128xf32>
    %15 = tpu.matmul %1, %14, %cst_16 {dimension_numbers = #tpu.dot_dimension_numbers<[1], [0], [0], [1], [0, 0, 1, 1], [], []>} : vector<64x128xbf16>, vector<128x128xbf16>, vector<64x128xf32> -> vector<64x128xf32>
    %c0_17 = arith.constant 0 : index
    %c0_18 = arith.constant 0 : index
    %16 = vector.load %arg8[%c0_17, %c0_18] : memref<64x128xf32, #tpu.memory_space<vmem>>, vector<64x128xf32>
    %c62_i32 = arith.constant 62 : i32
    %17 = tpu.dynamic_rotate %15 by %c62_i32 dim 0 : vector<64x128xf32>, i32 -> vector<64x128xf32>
    %18 = arith.addf %16, %17 : vector<64x128xf32>
    %c0_19 = arith.constant 0 : index
    %c0_20 = arith.constant 0 : index
    %19 = vector.load %arg8[%c0_19, %c0_20] : memref<64x128xf32, #tpu.memory_space<vmem>>, vector<64x128xf32>
    tpu.vector_store %arg8[%c0_19, %c0_20], %18 {strides = array<i32>} : memref<64x128xf32, #tpu.memory_space<vmem>>, vector<64x128xf32>,
    %c3 = arith.constant 3 : index
    %c0_21 = arith.constant 0 : index
    %c0_22 = arith.constant 0 : index
    %20 = vector.load %arg2[%c3, %c0_21, %c0_22] : memref<5x128x128xbf16, #tpu.memory_space<vmem>>, vector<1x128x128xbf16>
    %21 = vector.shape_cast %20 : vector<1x128x128xbf16> to vector<128x128xbf16>
    %cst_23 = arith.constant dense<0.000000e+00> : vector<64x128xf32>
    %22 = tpu.matmul %1, %21, %cst_23 {dimension_numbers = #tpu.dot_dimension_numbers<[1], [0], [0], [1], [0, 0, 1, 1], [], []>} : vector<64x128xbf16>, vector<128x128xbf16>, vector<64x128xf32> -> vector<64x128xf32>
    %c0_24 = arith.constant 0 : index
    %c0_25 = arith.constant 0 : index
    %23 = vector.load %arg8[%c0_24, %c0_25] : memref<64x128xf32, #tpu.memory_space<vmem>>, vector<64x128xf32>
    %c61_i32 = arith.constant 61 : i32
    %24 = tpu.dynamic_rotate %22 by %c61_i32 dim 0 : vector<64x128xf32>, i32 -> vector<64x128xf32>
    %25 = arith.addf %23, %24 : vector<64x128xf32>
    %c0_26 = arith.constant 0 : index
    %c0_27 = arith.constant 0 : index
    %26 = vector.load %arg8[%c0_26, %c0_27] : memref<64x128xf32, #tpu.memory_space<vmem>>, vector<64x128xf32>
    tpu.vector_store %arg8[%c0_26, %c0_27], %25 {strides = array<i32>} : memref<64x128xf32, #tpu.memory_space<vmem>>, vector<64x128xf32>,
    %c4 = arith.constant 4 : index
    %c0_28 = arith.constant 0 : index
    %c0_29 = arith.constant 0 : index
    %27 = vector.load %arg2[%c4, %c0_28, %c0_29] : memref<5x128x128xbf16, #tpu.memory_space<vmem>>, vector<1x128x128xbf16>
    %28 = vector.shape_cast %27 : vector<1x128x128xbf16> to vector<128x128xbf16>
    %cst_30 = arith.constant dense<0.000000e+00> : vector<64x128xf32>
    %29 = tpu.matmul %1, %28, %cst_30 {dimension_numbers = #tpu.dot_dimension_numbers<[1], [0], [0], [1], [0, 0, 1, 1], [], []>} : vector<64x128xbf16>, vector<128x128xbf16>, vector<64x128xf32> -> vector<64x128xf32>
    %c0_31 = arith.constant 0 : index
    %c0_32 = arith.constant 0 : index
    %30 = vector.load %arg8[%c0_31, %c0_32] : memref<64x128xf32, #tpu.memory_space<vmem>>, vector<64x128xf32>
    %c60_i32 = arith.constant 60 : i32
    %31 = tpu.dynamic_rotate %29 by %c60_i32 dim 0 : vector<64x128xf32>, i32 -> vector<64x128xf32>
    %32 = arith.addf %30, %31 : vector<64x128xf32>
    %c0_33 = arith.constant 0 : index
    %c0_34 = arith.constant 0 : index
    %33 = vector.load %arg8[%c0_33, %c0_34] : memref<64x128xf32, #tpu.memory_space<vmem>>, vector<64x128xf32>
    tpu.vector_store %arg8[%c0_33, %c0_34], %32 {strides = array<i32>} : memref<64x128xf32, #tpu.memory_space<vmem>>, vector<64x128xf32>,
    %c0_35 = arith.constant 0 : index
    %c0_36 = arith.constant 0 : index
    %34 = vector.load %arg8[%c0_35, %c0_36] : memref<64x128xf32, #tpu.memory_space<vmem>>, vector<64x128xf32>
    %35 = vector.shape_cast %34 : vector<64x128xf32> to vector<8x8x128xf32>
    %c0_37 = arith.constant 0 : index
    %c0_38 = arith.constant 0 : index
    %36 = vector.load %arg3[%c0_37, %c0_38] : memref<1x128xf32, #tpu.memory_space<vmem>>, vector<1x128xf32>
    %37 = vector.shape_cast %36 : vector<1x128xf32> to vector<1x1x128xf32>
    %38 = vector.broadcast %37 : vector<1x1x128xf32> to vector<8x8x128xf32>
    %39 = arith.addf %35, %38 : vector<8x8x128xf32>
    %cst_39 = arith.constant 0.000000e+00 : f32
    %40 = vector.broadcast %cst_39 : f32 to vector<8x8x128xf32>
    %41 = arith.maximumf %39, %40 : vector<8x8x128xf32>
    %c0_40 = arith.constant 0 : index
    %c0_41 = arith.constant 0 : index
    %c0_42 = arith.constant 0 : index
    %42 = vector.load %arg4[%c0_40, %c0_41, %c0_42] : memref<1x8x128xf32, #tpu.memory_space<vmem>>, vector<1x8x128xf32>
    %43 = vector.broadcast %42 : vector<1x8x128xf32> to vector<8x8x128xf32>
    %44 = arith.mulf %41, %43 : vector<8x8x128xf32>
    %cst_43 = arith.constant dense<0xFF800000> : vector<8x128xf32>
    %45 = vector.multi_reduction <maximumf>, %44, %cst_43 [1] : vector<8x8x128xf32> to vector<8x128xf32>
    %c0_44 = arith.constant 0 : index
    %c0_45 = arith.constant 0 : index
    %46 = vector.load %arg5[%c0_44, %c0_45] : memref<1x128xf32, #tpu.memory_space<vmem>>, vector<1x128xf32>
    %47 = vector.broadcast %46 : vector<1x128xf32> to vector<8x128xf32>
    %48 = arith.mulf %45, %47 : vector<8x128xf32>
    %cst_46 = arith.constant dense<0.000000e+00> : vector<8xf32>
    %49 = vector.multi_reduction <add>, %48, %cst_46 [1] : vector<8x128xf32> to vector<8xf32>
    %50 = vector.shape_cast %49 : vector<8xf32> to vector<8x1xf32>
    %c0_47 = arith.constant 0 : index
    %c0_48 = arith.constant 0 : index
    %51 = vector.load %arg6[%c0_47, %c0_48] : memref<1x1xf32, #tpu.memory_space<vmem>>, vector<1x1xf32>
    %52 = vector.broadcast %51 : vector<1x1xf32> to vector<8x1xf32>
    %53 = arith.addf %50, %52 : vector<8x1xf32>
    %54 = vector.shape_cast %53 : vector<8x1xf32> to vector<8x1xf32>
    %55 = vector.broadcast %54 : vector<8x1xf32> to vector<8x128xf32>
    %c0_49 = arith.constant 0 : index
    %c0_50 = arith.constant 0 : index
    %56 = vector.load %arg7[%c0_49, %c0_50] : memref<8x128xf32, #tpu.memory_space<vmem>>, vector<8x128xf32>
    tpu.vector_store %arg7[%c0_49, %c0_50], %55 {strides = array<i32>} : memref<8x128xf32, #tpu.memory_space<vmem>>, vector<8x128xf32>,
    return
  }
  func.func @transform_0(%arg0: i32) -> (i32, i32, i32) {
    %c0_i32 = arith.constant 0 : i32
    %c0_i32_0 = arith.constant 0 : i32
    %c0_i32_1 = arith.constant 0 : i32
    return %arg0, %c0_i32, %c0_i32_0 : i32, i32, i32
  }
  func.func @transform_1(%arg0: i32) -> (i32, i32, i32) {
    %c0_i32 = arith.constant 0 : i32
    %c0_i32_0 = arith.constant 0 : i32
    %c0_i32_1 = arith.constant 0 : i32
    %c0_i32_2 = arith.constant 0 : i32
    return %c0_i32, %c0_i32_0, %c0_i32_1 : i32, i32, i32
  }
  func.func @transform_2(%arg0: i32) -> (i32, i32) {
    %c0_i32 = arith.constant 0 : i32
    %c0_i32_0 = arith.constant 0 : i32
    %c0_i32_1 = arith.constant 0 : i32
    return %c0_i32, %c0_i32_0 : i32, i32
  }
  func.func @transform_3(%arg0: i32) -> (i32, i32, i32) {
    %c0_i32 = arith.constant 0 : i32
    %c0_i32_0 = arith.constant 0 : i32
    %c0_i32_1 = arith.constant 0 : i32
    %c0_i32_2 = arith.constant 0 : i32
    return %c0_i32, %c0_i32_0, %c0_i32_1 : i32, i32, i32
  }
  func.func @transform_4(%arg0: i32) -> (i32, i32) {
    %c0_i32 = arith.constant 0 : i32
    %c0_i32_0 = arith.constant 0 : i32
    %c0_i32_1 = arith.constant 0 : i32
    return %c0_i32, %c0_i32_0 : i32, i32
  }
  func.func @transform_5(%arg0: i32) -> (i32, i32) {
    %c0_i32 = arith.constant 0 : i32
    %c0_i32_0 = arith.constant 0 : i32
    %c0_i32_1 = arith.constant 0 : i32
    return %c0_i32, %c0_i32_0 : i32, i32
  }
  func.func @transform_6(%arg0: i32) -> (i32, i32) {
    %c0_i32 = arith.constant 0 : i32
    %c0_i32_0 = arith.constant 0 : i32
    return %arg0, %c0_i32 : i32, i32
  }
}

</mosaic_0001>

<llo_original>
// kernel: tpu_custom_call.1
$region0: #{tpu_custom_call.1}
  #allocation0 [shape = 'u32[]', space=smem, size = 0x4, offset = 0x4, fixed_abs, tag = 'smem constant byte address 0x4 - core index']
  #allocation1 [shape = 'u32[144,128]{1,0:T(1,128)}', space=vmem, size = 0x12000, scoped, tag = 'internal scratch']
  #allocation2 [shape = 'f32[64,128]{1,0:T(8,128)}', space=vmem, size = 0x8000, scoped, tag = 'scratch operand']
  #allocation3 [shape = 'f32[1,1]{1,0:T(1,128)S(1)}', space=vmem, size = 0x200, scoped, tag = 'scoped memory for tpu_custom_call.1']
  %s0 = inlined_call_operand.hbm [shape: bf16[16,8,128], index: 0, kind: input, shape index: {}]
  %s1 = inlined_call_operand.hbm [shape: bf16[5,128,128], index: 1, kind: input, shape index: {}]
  %s2 = inlined_call_operand.vmem [shape: f32[1,128], index: 2, kind: input, shape index: {}]
  %s3 = inlined_call_operand.vmem [shape: f32[1,8,128], index: 3, kind: input, shape index: {}]
  %s4 = inlined_call_operand.vmem [shape: f32[1,128], index: 4, kind: input, shape index: {}]
  %s5 = inlined_call_operand.<no memory space> [shape: f32[1,1], index: 5, kind: input, shape index: {}]
  %s6 = inlined_call_operand.hbm [shape: f32[16,128], index: 6, kind: output, shape index: {}]
  %s7 = sld [smem:[#allocation0]]
  $region65: #{tpu_custom_call.1} parent=0
    _
  %s9 = ssub.s32 1, %s7
  %s10 = scalar_select 0, %s9, %s7
  %v11 = vstv %s5
  %12 = vst [vmem:[#allocation3] sm:$0x1] %v11
  $region1: #{tpu_custom_call.1} parent=0
    #allocation4 [shape = 'u8[32768]{0}', space=vmem, size = 0x8000, scoped, tag = 'input window, operand 0']
    #allocation5 [shape = 's32[2]{0}', space=sflag, size = 0x8, scoped, tag = 'scoped memory for tpu_custom_call.1']
    #allocation6 [shape = 's32[2]{0}', space=sflag, size = 0x8, scoped, tag = 'scoped memory for tpu_custom_call.1']
    #allocation7 [shape = 'u8[163840]{0}', space=vmem, size = 0x28000, scoped, tag = 'input window, operand 1, single buffered']
    #allocation8 [shape = 's32[1]{0}', space=sflag, size = 0x4, scoped, tag = 'scoped memory for tpu_custom_call.1']
    #allocation9 [shape = 'u8[8192]{0}', space=vmem, size = 0x2000, scoped, tag = 'output window, operand 0']
    %13 = vsyncpa [#allocation5], 0
    %s14 = scalar_lea.sflag [#allocation5], 1
    %15 = vsyncpa %s14, 0
    %16 = vsyncpa [#allocation8], 0
    %17 = vsyncpa [#allocation6], 0
    %s18 = scalar_lea.sflag [#allocation6], 1
    %19 = vsyncpa %s18, 0
    loop: start=0, step=1, limit=4
    $region2: #{tpu_custom_call.1} parent=1 // loop_pre_header
      _
    $region3: #{tpu_custom_call.1} parent=1 // loop_header
      %s21 = sphi 0, %s25
      %p22 = scmp.ge.s32.totalorder %s21, 4
      %s31 = sphi 0, %s33
      %s34 = sphi 0, %s31
      %s35 = sphi 0, %s34
      %s51 = sphi 0, %s35
      %s55 = sphi 0, %s55
      %s57 = sphi 0, %s55
      %s58 = sphi 0, %s57
      %s72 = sphi 0, %s58
      %s76 = sphi 0, %s76
      %s78 = sphi 0, %s76
      %s79 = sphi 0, %s78
      %s93 = sphi 0, %s79
      %s97 = sphi 0, %s97
      %s99 = sphi 0, %s97
      %s100 = sphi 0, %s99
      %s114 = sphi 0, %s100
      %s118 = sphi 0, %s118
      %s120 = sphi 0, %s118
      %s121 = sphi 0, %s120
      %s135 = sphi 0, %s121
      %s139 = sphi 0, %s139
      %s141 = sphi 0, %s139
      %s142 = sphi 0, %s141
      %s156 = sphi 0, %s142
      %s162 = sphi 0, %s164
      %s165 = sphi 0, %s162
      %s166 = sphi 0, %s165
      %s182 = sphi 0, %s166
    $region4: #{tpu_custom_call.1} parent=1 // loop_header_branch
      %24 = sbr.rel (%p22) target = $region8
    $region5: #{tpu_custom_call.1} parent=1 // loop_body
      %s26 = ssub.s32 %s21, 1
      %s27 = ssub.s32 %s21, 2
      %s28 = sadd.s32 %s21, 1
      %s29 = ssub.s32 %s21, %s28
      %p30 = scmp.eq.s32.totalorder %s29, 0
      %s32 = sadd.s32 %s31, 1
      %s33 = scalar_select %p30, %s31, %s32
      %p36 = pneg %p30
      %p37 = scmp.eq.s32.totalorder %s21, 1
      %p38 = por %p36, %p37
      %p39 = scmp.ne.s32.totalorder %s31, %s34
      %p40 = scmp.eq.s32.totalorder %s21, 0
      %p41 = por %p39, %p40
      %p42 = scmp.ne.s32.totalorder %s31, %s34
      %p43 = scmp.eq.s32.totalorder %s26, 1
      %p44 = por %p42, %p43
      %p45 = scmp.ne.s32.totalorder %s34, %s35
      %p46 = scmp.eq.s32.totalorder %s26, 0
      %p47 = por %p45, %p46
      %p48 = scmp.ne.s32.totalorder %s34, %s35
      %p49 = scmp.eq.s32.totalorder %s27, 1
      %p50 = por %p48, %p49
      %p52 = scmp.ne.s32.totalorder %s35, %s51
      %p53 = scmp.eq.s32.totalorder %s27, 0
      %p54 = por %p52, %p53
      %s56 = sadd.s32 %s55, 1
      %p59 = scmp.eq.s32.totalorder %s21, 1
      %p60 = scmp.ne.s32.totalorder %s55, %s57
      %p61 = scmp.eq.s32.totalorder %s21, 0
      %p62 = por %p60, %p61
      %p63 = scmp.ne.s32.totalorder %s55, %s57
      %p64 = scmp.eq.s32.totalorder %s26, 1
      %p65 = por %p63, %p64
      %p66 = scmp.ne.s32.totalorder %s57, %s58
      %p67 = scmp.eq.s32.totalorder %s26, 0
      %p68 = por %p66, %p67
      %p69 = scmp.ne.s32.totalorder %s57, %s58
      %p70 = scmp.eq.s32.totalorder %s27, 1
      %p71 = por %p69, %p70
      %p73 = scmp.ne.s32.totalorder %s58, %s72
      %p74 = scmp.eq.s32.totalorder %s27, 0
      %p75 = por %p73, %p74
      %s77 = sadd.s32 %s76, 1
      %p80 = scmp.eq.s32.totalorder %s21, 1
      %p81 = scmp.ne.s32.totalorder %s76, %s78
      %p82 = scmp.eq.s32.totalorder %s21, 0
      %p83 = por %p81, %p82
      %p84 = scmp.ne.s32.totalorder %s76, %s78
      %p85 = scmp.eq.s32.totalorder %s26, 1
      %p86 = por %p84, %p85
      %p87 = scmp.ne.s32.totalorder %s78, %s79
      %p88 = scmp.eq.s32.totalorder %s26, 0
      %p89 = por %p87, %p88
      %p90 = scmp.ne.s32.totalorder %s78, %s79
      %p91 = scmp.eq.s32.totalorder %s27, 1
      %p92 = por %p90, %p91
      %p94 = scmp.ne.s32.totalorder %s79, %s93
      %p95 = scmp.eq.s32.totalorder %s27, 0
      %p96 = por %p94, %p95
      %s98 = sadd.s32 %s97, 1
      %p101 = scmp.eq.s32.totalorder %s21, 1
      %p102 = scmp.ne.s32.totalorder %s97, %s99
      %p103 = scmp.eq.s32.totalorder %s21, 0
      %p104 = por %p102, %p103
      %p105 = scmp.ne.s32.totalorder %s97, %s99
      %p106 = scmp.eq.s32.totalorder %s26, 1
      %p107 = por %p105, %p106
      %p108 = scmp.ne.s32.totalorder %s99, %s100
      %p109 = scmp.eq.s32.totalorder %s26, 0
      %p110 = por %p108, %p109
      %p111 = scmp.ne.s32.totalorder %s99, %s100
      %p112 = scmp.eq.s32.totalorder %s27, 1
      %p113 = por %p111, %p112
      %p115 = scmp.ne.s32.totalorder %s100, %s114
      %p116 = scmp.eq.s32.totalorder %s27, 0
      %p117 = por %p115, %p116
      %s119 = sadd.s32 %s118, 1
      %p122 = scmp.eq.s32.totalorder %s21, 1
      %p123 = scmp.ne.s32.totalorder %s118, %s120
      %p124 = scmp.eq.s32.totalorder %s21, 0
      %p125 = por %p123, %p124
      %p126 = scmp.ne.s32.totalorder %s118, %s120
      %p127 = scmp.eq.s32.totalorder %s26, 1
      %p128 = por %p126, %p127
      %p129 = scmp.ne.s32.totalorder %s120, %s121
      %p130 = scmp.eq.s32.totalorder %s26, 0
      %p131 = por %p129, %p130
      %p132 = scmp.ne.s32.totalorder %s120, %s121
      %p133 = scmp.eq.s32.totalorder %s27, 1
      %p134 = por %p132, %p133
      %p136 = scmp.ne.s32.totalorder %s121, %s135
      %p137 = scmp.eq.s32.totalorder %s27, 0
      %p138 = por %p136, %p137
      %s140 = sadd.s32 %s139, 1
      %p143 = scmp.eq.s32.totalorder %s21, 1
      %p144 = scmp.ne.s32.totalorder %s139, %s141
      %p145 = scmp.eq.s32.totalorder %s21, 0
      %p146 = por %p144, %p145
      %p147 = scmp.ne.s32.totalorder %s139, %s141
      %p148 = scmp.eq.s32.totalorder %s26, 1
      %p149 = por %p147, %p148
      %p150 = scmp.ne.s32.totalorder %s141, %s142
      %p151 = scmp.eq.s32.totalorder %s26, 0
      %p152 = por %p150, %p151
      %p153 = scmp.ne.s32.totalorder %s141, %s142
      %p154 = scmp.eq.s32.totalorder %s27, 1
      %p155 = por %p153, %p154
      %p157 = scmp.ne.s32.totalorder %s142, %s156
      %p158 = scmp.eq.s32.totalorder %s27, 0
      %p159 = por %p157, %p158
      %s160 = ssub.s32 %s21, %s28
      %p161 = scmp.eq.s32.totalorder %s160, 0
      %s163 = sadd.s32 %s162, 1
      %s164 = scalar_select %p161, %s162, %s163
      %p167 = pneg %p161
      %p168 = scmp.eq.s32.totalorder %s21, 1
      %p169 = por %p167, %p168
      %p170 = scmp.ne.s32.totalorder %s162, %s165
      %p171 = scmp.eq.s32.totalorder %s21, 0
      %p172 = por %p170, %p171
      %p173 = scmp.ne.s32.totalorder %s162, %s165
      %p174 = scmp.eq.s32.totalorder %s26, 1
      %p175 = por %p173, %p174
      %p176 = scmp.ne.s32.totalorder %s165, %s166
      %p177 = scmp.eq.s32.totalorder %s26, 0
      %p178 = por %p176, %p177
      %p179 = scmp.ne.s32.totalorder %s165, %s166
      %p180 = scmp.eq.s32.totalorder %s27, 1
      %p181 = por %p179, %p180
      %p183 = scmp.ne.s32.totalorder %s166, %s182
      %p184 = scmp.eq.s32.totalorder %s27, 0
      %p185 = por %p183, %p184
      %p186 = scmp.le.s32.totalorder 1, %s21
      %p187 = scmp.lt.s32.totalorder %s21, 3
      %p188 = pnand %p186, %p187
      %p189 = pneg %p188
      // Predicated region
      $region9: #{tpu_custom_call.1} parent=5 // pred_check
        _
      $region10: #{tpu_custom_call.1} parent=5 // pred_check_branch
        %191 = sbr.rel (%p188) target = $region12
      $region11: #{tpu_custom_call.1} parent=5 // pred_region
        %s192 = ssub.s32 %s21, 1
        // Predicated region
        $region13: #{tpu_custom_call.1} parent=11 // pred_check
          %p193 = pneg %p68
        $region14: #{tpu_custom_call.1} parent=11 // pred_check_branch
          %195 = sbr.rel (%p193) target = $region16
        $region15: #{tpu_custom_call.1} parent=11 // pred_region
          %s197 = ssub.s32 5120, 5120
          %198 = vsyncadd [#allocation8], %s197
          %s199 = sshll.u32 [#allocation7], 4
          %s200 = int_to_ptr.vmem [resolvable:$true] %s199
          %205 = dma.hbm_to_vmem [thread:$0]  %s1, 5120, %s200, [#allocation8], 64, 64, 4
        $region16: #{tpu_custom_call.1} parent=11 // pred_fallthru
          _
        // Predicated region
        $region17: #{tpu_custom_call.1} parent=11 // pred_check
          %p206 = pneg %p89
        $region18: #{tpu_custom_call.1} parent=11 // pred_check_branch
          %208 = sbr.rel (%p206) target = $region20
        $region19: #{tpu_custom_call.1} parent=11 // pred_region
          _
        $region20: #{tpu_custom_call.1} parent=11 // pred_fallthru
          _
        // Predicated region
        $region21: #{tpu_custom_call.1} parent=11 // pred_check
          %p209 = pneg %p110
        $region22: #{tpu_custom_call.1} parent=11 // pred_check_branch
          %211 = sbr.rel (%p209) target = $region24
        $region23: #{tpu_custom_call.1} parent=11 // pred_region
          _
        $region24: #{tpu_custom_call.1} parent=11 // pred_fallthru
          _
        // Predicated region
        $region25: #{tpu_custom_call.1} parent=11 // pred_check
          %p212 = pneg %p131
        $region26: #{tpu_custom_call.1} parent=11 // pred_check_branch
          %214 = sbr.rel (%p212) target = $region28
        $region27: #{tpu_custom_call.1} parent=11 // pred_region
          _
        $region28: #{tpu_custom_call.1} parent=11 // pred_fallthru
          _
        // Predicated region
        $region29: #{tpu_custom_call.1} parent=11 // pred_check
          %p215 = pneg %p152
        $region30: #{tpu_custom_call.1} parent=11 // pred_check_branch
          %217 = sbr.rel (%p215) target = $region32
        $region31: #{tpu_custom_call.1} parent=11 // pred_region
          _
        $region32: #{tpu_custom_call.1} parent=11 // pred_fallthru
          _
      $region12: #{tpu_custom_call.1} parent=5 // pred_fallthru
        _
      %p218 = scmp.lt.s32.totalorder %s21, 2
      // Predicated region
      $region33: #{tpu_custom_call.1} parent=5 // pred_check
        %p219 = pneg %p218
      $region34: #{tpu_custom_call.1} parent=5 // pred_check_branch
        %221 = sbr.rel (%p219) target = $region36
      $region35: #{tpu_custom_call.1} parent=5 // pred_region
        // Predicated region
        $region37: #{tpu_custom_call.1} parent=35 // pred_check
          %p222 = pneg %p41
        $region38: #{tpu_custom_call.1} parent=35 // pred_check_branch
          %224 = sbr.rel (%p222) target = $region40
        $region39: #{tpu_custom_call.1} parent=35 // pred_region
          %s225 = sand.u32 %s31, 1
          %s226 = scalar_lea.sflag [#allocation5], %s225
          %s227 = sand.u32 %s31, 1
          %s228 = smul.addr %s227, 32
          %s229 = scalar_lea.vmem [#allocation4], %s228
          %s230 = smul.u32 8, %s21
          %s232 = ssub.s32 512, 512
          %233 = vsyncadd %s226, %s232
          %s234 = smul.addr %s230, 64
          %s235 = scalar_lea.hbm %s0, %s234
          %s236 = sshll.u32 %s229, 4
          %s237 = int_to_ptr.vmem [resolvable:$true] %s236
          %242 = dma.hbm_to_vmem [thread:$0]  %s235, 512, %s237, %s226, 64, 64, 4
        $region40: #{tpu_custom_call.1} parent=35 // pred_fallthru
          _
      $region36: #{tpu_custom_call.1} parent=5 // pred_fallthru
        _
      %p243 = scmp.le.s32.totalorder 1, %s21
      %p244 = scmp.lt.s32.totalorder %s21, 3
      %p245 = pnand %p243, %p244
      %p246 = pneg %p245
      // Predicated region
      $region41: #{tpu_custom_call.1} parent=5 // pred_check
        _
      $region42: #{tpu_custom_call.1} parent=5 // pred_check_branch
        %248 = sbr.rel (%p245) target = $region44
      $region43: #{tpu_custom_call.1} parent=5 // pred_region
        %s249 = ssub.s32 %s21, 1
        %s250 = sand.u32 %s34, 1
        %s251 = scalar_lea.sflag [#allocation5], %s250
        %s252 = sand.u32 %s34, 1
        %s253 = smul.addr %s252, 32
        %s254 = scalar_lea.vmem [#allocation4], %s253
        // Predicated region
        $region45: #{tpu_custom_call.1} parent=43 // pred_check
          %p255 = pneg %p47
        $region46: #{tpu_custom_call.1} parent=43 // pred_check_branch
          %257 = sbr.rel (%p255) target = $region48
        $region47: #{tpu_custom_call.1} parent=43 // pred_region
          %258 = dma.done %s251, 512
        $region48: #{tpu_custom_call.1} parent=43 // pred_fallthru
          _
        // Predicated region
        $region49: #{tpu_custom_call.1} parent=43 // pred_check
          %p259 = pneg %p68
        $region50: #{tpu_custom_call.1} parent=43 // pred_check_branch
          %261 = sbr.rel (%p259) target = $region52
        $region51: #{tpu_custom_call.1} parent=43 // pred_region
          %262 = dma.done [#allocation8], 5120
        $region52: #{tpu_custom_call.1} parent=43 // pred_fallthru
          _
        %s263 = sand.u32 %s34, 1
        %s264 = scalar_lea.sflag [#allocation5], %s263
        %s265 = sand.u32 %s34, 1
        %s266 = smul.addr %s265, 32
        %s267 = scalar_lea.vmem [#allocation4], %s266
        %p268 = pneg %p47
        %p269 = pneg %p44
        %p270 = pneg %p68
        %p271 = pneg %p65
        %p272 = pneg %p89
        %p273 = pneg %p86
        %p274 = pneg %p110
        %p275 = pneg %p107
        %p276 = pneg %p131
        %p277 = pneg %p128
        %p278 = pneg %p152
        %p279 = pneg %p149
        %p280 = pneg %p178
        %p281 = pneg %p175
        %s282 = sand.u32 %s165, 1
        %s283 = scalar_lea.sflag [#allocation6], %s282
        %s284 = sand.u32 %s165, 1
        %s285 = smul.addr %s284, 8
        %s286 = scalar_lea.vmem [#allocation9], %s285
        %s287 = smul.u32 8, %s26
        %v289 = vld [vmem:[%s254] sm:$0xf]
        %v290 = vld [vmem:[%s254 + $0x4] sm:$0xf]
        %v291 = vld [vmem:[%s254 + $0x8] sm:$0xf]
        %v292 = vld [vmem:[%s254 + $0xc] sm:$0xf]
        %v293 = vld [vmem:[%s254 + $0x10] sm:$0xf]
        %v294 = vld [vmem:[%s254 + $0x14] sm:$0xf]
        %v295 = vld [vmem:[%s254 + $0x18] sm:$0xf]
        %v296 = vld [vmem:[%s254 + $0x1c] sm:$0xf]
        %v297 = vld [vmem:[#allocation7] sm:$0xf]
        %v298 = vld [vmem:[#allocation7 + $0x4] sm:$0xf]
        %v299 = vld [vmem:[#allocation7 + $0x8] sm:$0xf]
        %v300 = vld [vmem:[#allocation7 + $0xc] sm:$0xf]
        %v301 = vld [vmem:[#allocation7 + $0x10] sm:$0xf]
        %v302 = vld [vmem:[#allocation7 + $0x14] sm:$0xf]
        %v303 = vld [vmem:[#allocation7 + $0x18] sm:$0xf]
        %v304 = vld [vmem:[#allocation7 + $0x1c] sm:$0xf]
        %v305 = vld [vmem:[#allocation7 + $0x20] sm:$0xf]
        %v306 = vld [vmem:[#allocation7 + $0x24] sm:$0xf]
        %v307 = vld [vmem:[#allocation7 + $0x28] sm:$0xf]
        %v308 = vld [vmem:[#allocation7 + $0x2c] sm:$0xf]
        %v309 = vld [vmem:[#allocation7 + $0x30] sm:$0xf]
        %v310 = vld [vmem:[#allocation7 + $0x34] sm:$0xf]
        %v311 = vld [vmem:[#allocation7 + $0x38] sm:$0xf]
        %v312 = vld [vmem:[#allocation7 + $0x3c] sm:$0xf]
        %v321 = vunpack.c.l.b16 %v289
        %v322 = vunpack.c.l.b16 %v290
        %v323 = vunpack.c.l.b16 %v291
        %v324 = vunpack.c.l.b16 %v292
        %v325 = vunpack.c.l.b16 %v293
        %v326 = vunpack.c.l.b16 %v294
        %v327 = vunpack.c.l.b16 %v295
        %v328 = vunpack.c.l.b16 %v296
        %v329 = vpack.c.b16 %v322, %v321
        %v330 = vpack.c.b16 %v324, %v323
        %v331 = vpack.c.b16 %v326, %v325
        %v332 = vpack.c.b16 %v328, %v327
        %v353 = vunpack.c.l.b16 %v297
        %v354 = vunpack.c.l.b16 %v298
        %v355 = vunpack.c.l.b16 %v299
        %v356 = vunpack.c.l.b16 %v300
        %v357 = vunpack.c.l.b16 %v301
        %v358 = vunpack.c.l.b16 %v302
        %v359 = vunpack.c.l.b16 %v303
        %v360 = vunpack.c.l.b16 %v304
        %v361 = vunpack.c.l.b16 %v305
        %v362 = vunpack.c.l.b16 %v306
        %v363 = vunpack.c.l.b16 %v307
        %v364 = vunpack.c.l.b16 %v308
        %v365 = vunpack.c.l.b16 %v309
        %v366 = vunpack.c.l.b16 %v310
        %v367 = vunpack.c.l.b16 %v311
        %v368 = vunpack.c.l.b16 %v312
        %v369 = vpack.c.b16 %v354, %v353
        %v370 = vpack.c.b16 %v356, %v355
        %v371 = vpack.c.b16 %v358, %v357
        %v372 = vpack.c.b16 %v360, %v359
        %v373 = vpack.c.b16 %v362, %v361
        %v374 = vpack.c.b16 %v364, %v363
        %v375 = vpack.c.b16 %v366, %v365
        %v376 = vpack.c.b16 %v368, %v367
        %385 = vmatprep.subr.bf16.mxu0 0
        %386 = vmatpush1.bf16.msra.mxu0 %v369
        %387 = vmatprep.subr.bf16.mxu0 0
        %388 = vmatpush1.bf16.msra.mxu0 %v370
        %389 = vmatprep.subr.bf16.mxu0 0
        %390 = vmatpush1.bf16.msra.mxu0 %v371
        %391 = vmatprep.subr.bf16.mxu0 0
        %392 = vmatpush1.bf16.msra.mxu0 %v372
        %393 = vmatprep.subr.bf16.mxu0 0
        %394 = vmatpush1.bf16.msra.mxu0 %v373
        %395 = vmatprep.subr.bf16.mxu0 0
        %396 = vmatpush1.bf16.msra.mxu0 %v374
        %397 = vmatprep.subr.bf16.mxu0 0
        %398 = vmatpush1.bf16.msra.mxu0 %v375
        %399 = vmatprep.subr.bf16.mxu0 0
        %400 = vmatpush1.bf16.msra.mxu0 %v376
        %401 = vmatprep.subr.bf16.mxu0 0
        %402 = vmatpush1.bf16.msra.mxu0 0
        %403 = vmatprep.subr.bf16.mxu0 0
        %404 = vmatpush1.bf16.msra.mxu0 0
        %405 = vmatprep.subr.bf16.mxu0 0
        %406 = vmatpush1.bf16.msra.mxu0 0
        %407 = vmatprep.subr.bf16.mxu0 0
        %408 = vmatpush1.bf16.msra.mxu0 0
        %409 = vmatprep.subr.bf16.mxu0 0
        %410 = vmatpush1.bf16.msra.mxu0 0
        %411 = vmatprep.subr.bf16.mxu0 0
        %412 = vmatpush1.bf16.msra.mxu0 0
        %413 = vmatprep.subr.bf16.mxu0 0
        %414 = vmatpush1.bf16.msra.mxu0 0
        %415 = vmatprep.subr.bf16.mxu0 0
        %416 = vmatpush1.bf16.msra.mxu0 0
        %417 = vmatprep.mubr.bf16.mxu0 0
        %418 = vmatmul.mubr.bf16.gmra.mrb[0].mxu0 %v329
        %v419 = vpop.f32.mrb[0].mxu0
        %v420 = vadd.f32 0.0, %v419
        %v421 = vpop.f32.mrb[0].mxu0
        %v422 = vpop.f32.mrb[0].mxu0
        %v423 = vadd.f32 0.0, %v422
        %v424 = vpop.f32.mrb[0].mxu0
        %425 = vmatprep.mubr.bf16.mxu0 0
        %426 = vmatmul.mubr.bf16.gmra.mrb[0].mxu0 %v330
        %v427 = vpop.f32.mrb[0].mxu0
        %v428 = vadd.f32 0.0, %v427
        %v429 = vpop.f32.mrb[0].mxu0
        %v430 = vpop.f32.mrb[0].mxu0
        %v431 = vadd.f32 0.0, %v430
        %v432 = vpop.f32.mrb[0].mxu0
        %433 = vmatprep.mubr.bf16.mxu0 0
        %434 = vmatmul.mubr.bf16.gmra.mrb[0].mxu0 %v331
        %v435 = vpop.f32.mrb[0].mxu0
        %v436 = vadd.f32 0.0, %v435
        %v437 = vpop.f32.mrb[0].mxu0
        %v438 = vpop.f32.mrb[0].mxu0
        %v439 = vadd.f32 0.0, %v438
        %v440 = vpop.f32.mrb[0].mxu0
        %441 = vmatprep.mubr.bf16.mxu0 0
        %442 = vmatmul.mubr.bf16.gmra.mrb[0].mxu0 %v332
        %v443 = vpop.f32.mrb[0].mxu0
        %v444 = vadd.f32 0.0, %v443
        %v445 = vpop.f32.mrb[0].mxu0
        %v446 = vpop.f32.mrb[0].mxu0
        %v447 = vadd.f32 0.0, %v446
        %v448 = vpop.f32.mrb[0].mxu0
        %449 = vdwg.mxu0
        %450 = vst [vmem:[#allocation2] sm:$0xff] %v420
        %451 = vst [vmem:[#allocation2 + $0x8] sm:$0xff] %v423
        %452 = vst [vmem:[#allocation2 + $0x10] sm:$0xff] %v428
        %453 = vst [vmem:[#allocation2 + $0x18] sm:$0xff] %v431
        %454 = vst [vmem:[#allocation2 + $0x20] sm:$0xff] %v436
        %455 = vst [vmem:[#allocation2 + $0x28] sm:$0xff] %v439
        %456 = vst [vmem:[#allocation2 + $0x30] sm:$0xff] %v444
        %457 = vst [vmem:[#allocation2 + $0x38] sm:$0xff] %v447
        %s458 = scalar_lea.vmem [#allocation7], 64
        %v459 = vld [vmem:[%s458] sm:$0xf]
        %v460 = vld [vmem:[%s458 + $0x4] sm:$0xf]
        %v461 = vld [vmem:[%s458 + $0x8] sm:$0xf]
        %v462 = vld [vmem:[%s458 + $0xc] sm:$0xf]
        %v463 = vld [vmem:[%s458 + $0x10] sm:$0xf]
        %v464 = vld [vmem:[%s458 + $0x14] sm:$0xf]
        %v465 = vld [vmem:[%s458 + $0x18] sm:$0xf]
        %v466 = vld [vmem:[%s458 + $0x1c] sm:$0xf]
        %v467 = vld [vmem:[%s458 + $0x20] sm:$0xf]
        %v468 = vld [vmem:[%s458 + $0x24] sm:$0xf]
        %v469 = vld [vmem:[%s458 + $0x28] sm:$0xf]
        %v470 = vld [vmem:[%s458 + $0x2c] sm:$0xf]
        %v471 = vld [vmem:[%s458 + $0x30] sm:$0xf]
        %v472 = vld [vmem:[%s458 + $0x34] sm:$0xf]
        %v473 = vld [vmem:[%s458 + $0x38] sm:$0xf]
        %v474 = vld [vmem:[%s458 + $0x3c] sm:$0xf]
        %v491 = vunpack.c.l.b16 %v459
        %v492 = vunpack.c.l.b16 %v460
        %v493 = vunpack.c.l.b16 %v461
        %v494 = vunpack.c.l.b16 %v462
        %v495 = vunpack.c.l.b16 %v463
        %v496 = vunpack.c.l.b16 %v464
        %v497 = vunpack.c.l.b16 %v465
        %v498 = vunpack.c.l.b16 %v466
        %v499 = vunpack.c.l.b16 %v467
        %v500 = vunpack.c.l.b16 %v468
        %v501 = vunpack.c.l.b16 %v469
        %v502 = vunpack.c.l.b16 %v470
        %v503 = vunpack.c.l.b16 %v471
        %v504 = vunpack.c.l.b16 %v472
        %v505 = vunpack.c.l.b16 %v473
        %v506 = vunpack.c.l.b16 %v474
        %v507 = vpack.c.b16 %v492, %v491
        %v508 = vpack.c.b16 %v494, %v493
        %v509 = vpack.c.b16 %v496, %v495
        %v510 = vpack.c.b16 %v498, %v497
        %v511 = vpack.c.b16 %v500, %v499
        %v512 = vpack.c.b16 %v502, %v501
        %v513 = vpack.c.b16 %v504, %v503
        %v514 = vpack.c.b16 %v506, %v505
        %523 = vmatprep.subr.bf16.mxu0 0
        %524 = vmatpush1.bf16.msra.mxu0 %v507
        %525 = vmatprep.subr.bf16.mxu0 0
        %526 = vmatpush1.bf16.msra.mxu0 %v508
        %527 = vmatprep.subr.bf16.mxu0 0
        %528 = vmatpush1.bf16.msra.mxu0 %v509
        %529 = vmatprep.subr.bf16.mxu0 0
        %530 = vmatpush1.bf16.msra.mxu0 %v510
        %531 = vmatprep.subr.bf16.mxu0 0
        %532 = vmatpush1.bf16.msra.mxu0 %v511
        %533 = vmatprep.subr.bf16.mxu0 0
        %534 = vmatpush1.bf16.msra.mxu0 %v512
        %535 = vmatprep.subr.bf16.mxu0 0
        %536 = vmatpush1.bf16.msra.mxu0 %v513
        %537 = vmatprep.subr.bf16.mxu0 0
        %538 = vmatpush1.bf16.msra.mxu0 %v514
        %539 = vmatprep.subr.bf16.mxu0 0
        %540 = vmatpush1.bf16.msra.mxu0 0
        %541 = vmatprep.subr.bf16.mxu0 0
        %542 = vmatpush1.bf16.msra.mxu0 0
        %543 = vmatprep.subr.bf16.mxu0 0
        %544 = vmatpush1.bf16.msra.mxu0 0
        %545 = vmatprep.subr.bf16.mxu0 0
        %546 = vmatpush1.bf16.msra.mxu0 0
        %547 = vmatprep.subr.bf16.mxu0 0
        %548 = vmatpush1.bf16.msra.mxu0 0
        %549 = vmatprep.subr.bf16.mxu0 0
        %550 = vmatpush1.bf16.msra.mxu0 0
        %551 = vmatprep.subr.bf16.mxu0 0
        %552 = vmatpush1.bf16.msra.mxu0 0
        %553 = vmatprep.subr.bf16.mxu0 0
        %554 = vmatpush1.bf16.msra.mxu0 0
        %555 = vmatprep.mubr.bf16.mxu0 0
        %556 = vmatmul.mubr.bf16.gmra.mrb[0].mxu0 %v329
        %v557 = vpop.f32.mrb[0].mxu0
        %v558 = vadd.f32 0.0, %v557
        %v559 = vpop.f32.mrb[0].mxu0
        %v560 = vpop.f32.mrb[0].mxu0
        %v561 = vadd.f32 0.0, %v560
        %v562 = vpop.f32.mrb[0].mxu0
        %563 = vmatprep.mubr.bf16.mxu0 0
        %564 = vmatmul.mubr.bf16.gmra.mrb[0].mxu0 %v330
        %v565 = vpop.f32.mrb[0].mxu0
        %v566 = vadd.f32 0.0, %v565
        %v567 = vpop.f32.mrb[0].mxu0
        %v568 = vpop.f32.mrb[0].mxu0
        %v569 = vadd.f32 0.0, %v568
        %v570 = vpop.f32.mrb[0].mxu0
        %571 = vmatprep.mubr.bf16.mxu0 0
        %572 = vmatmul.mubr.bf16.gmra.mrb[0].mxu0 %v331
        %v573 = vpop.f32.mrb[0].mxu0
        %v574 = vadd.f32 0.0, %v573
        %v575 = vpop.f32.mrb[0].mxu0
        %v576 = vpop.f32.mrb[0].mxu0
        %v577 = vadd.f32 0.0, %v576
        %v578 = vpop.f32.mrb[0].mxu0
        %579 = vmatprep.mubr.bf16.mxu0 0
        %580 = vmatmul.mubr.bf16.gmra.mrb[0].mxu0 %v332
        %v581 = vpop.f32.mrb[0].mxu0
        %v582 = vadd.f32 0.0, %v581
        %v583 = vpop.f32.mrb[0].mxu0
        %v584 = vpop.f32.mrb[0].mxu0
        %v585 = vadd.f32 0.0, %v584
        %v586 = vpop.f32.mrb[0].mxu0
        %587 = vdwg.mxu0
        %v588 = vld [vmem:[#allocation2] sm:$0xff]
        %v589 = vld [vmem:[#allocation2 + $0x8] sm:$0xff]
        %v590 = vld [vmem:[#allocation2 + $0x10] sm:$0xff]
        %v591 = vld [vmem:[#allocation2 + $0x18] sm:$0xff]
        %v592 = vld [vmem:[#allocation2 + $0x20] sm:$0xff]
        %v593 = vld [vmem:[#allocation2 + $0x28] sm:$0xff]
        %v594 = vld [vmem:[#allocation2 + $0x30] sm:$0xff]
        %v595 = vld [vmem:[#allocation2 + $0x38] sm:$0xff]
        %v596 = vrot.slane %v558, 1
        %v597 = vrot.slane %v561, 1
        %v598 = vrot.slane %v566, 1
        %v599 = vrot.slane %v569, 1
        %v600 = vrot.slane %v574, 1
        %v601 = vrot.slane %v577, 1
        %v602 = vrot.slane %v582, 1
        %v603 = vrot.slane %v585, 1
        %v604 = vlaneseq
        %v605 = vshrl.u32 %v604, 7
        %vm606 = vcmp.lt.s32.totalorder %v605, 7
        %v607 = vsel %vm606, %v602, %v603
        %v608 = vsel %vm606, %v601, %v602
        %v609 = vsel %vm606, %v600, %v601
        %v610 = vsel %vm606, %v599, %v600
        %v611 = vsel %vm606, %v598, %v599
        %v612 = vsel %vm606, %v597, %v598
        %v613 = vsel %vm606, %v596, %v597
        %v614 = vsel %vm606, %v603, %v596
        %v615 = vadd.f32 %v588, %v613
        %v616 = vadd.f32 %v589, %v612
        %v617 = vadd.f32 %v590, %v611
        %v618 = vadd.f32 %v591, %v610
        %v619 = vadd.f32 %v592, %v609
        %v620 = vadd.f32 %v593, %v608
        %v621 = vadd.f32 %v594, %v607
        %v622 = vadd.f32 %v595, %v614
        %623 = vst [vmem:[#allocation2] sm:$0xff] %v615
        %624 = vst [vmem:[#allocation2 + $0x8] sm:$0xff] %v616
        %625 = vst [vmem:[#allocation2 + $0x10] sm:$0xff] %v617
        %626 = vst [vmem:[#allocation2 + $0x18] sm:$0xff] %v618
        %627 = vst [vmem:[#allocation2 + $0x20] sm:$0xff] %v619
        %628 = vst [vmem:[#allocation2 + $0x28] sm:$0xff] %v620
        %629 = vst [vmem:[#allocation2 + $0x30] sm:$0xff] %v621
        %630 = vst [vmem:[#allocation2 + $0x38] sm:$0xff] %v622
        %s631 = scalar_lea.vmem [#allocation7], 128
        %v632 = vld [vmem:[%s631] sm:$0xf]
        %v633 = vld [vmem:[%s631 + $0x4] sm:$0xf]
        %v634 = vld [vmem:[%s631 + $0x8] sm:$0xf]
        %v635 = vld [vmem:[%s631 + $0xc] sm:$0xf]
        %v636 = vld [vmem:[%s631 + $0x10] sm:$0xf]
        %v637 = vld [vmem:[%s631 + $0x14] sm:$0xf]
        %v638 = vld [vmem:[%s631 + $0x18] sm:$0xf]
        %v639 = vld [vmem:[%s631 + $0x1c] sm:$0xf]
        %v640 = vld [vmem:[%s631 + $0x20] sm:$0xf]
        %v641 = vld [vmem:[%s631 + $0x24] sm:$0xf]
        %v642 = vld [vmem:[%s631 + $0x28] sm:$0xf]
        %v643 = vld [vmem:[%s631 + $0x2c] sm:$0xf]
        %v644 = vld [vmem:[%s631 + $0x30] sm:$0xf]
        %v645 = vld [vmem:[%s631 + $0x34] sm:$0xf]
        %v646 = vld [vmem:[%s631 + $0x38] sm:$0xf]
        %v647 = vld [vmem:[%s631 + $0x3c] sm:$0xf]
        %v664 = vunpack.c.l.b16 %v632
        %v665 = vunpack.c.l.b16 %v633
        %v666 = vunpack.c.l.b16 %v634
        %v667 = vunpack.c.l.b16 %v635
        %v668 = vunpack.c.l.b16 %v636
        %v669 = vunpack.c.l.b16 %v637
        %v670 = vunpack.c.l.b16 %v638
        %v671 = vunpack.c.l.b16 %v639
        %v672 = vunpack.c.l.b16 %v640
        %v673 = vunpack.c.l.b16 %v641
        %v674 = vunpack.c.l.b16 %v642
        %v675 = vunpack.c.l.b16 %v643
        %v676 = vunpack.c.l.b16 %v644
        %v677 = vunpack.c.l.b16 %v645
        %v678 = vunpack.c.l.b16 %v646
        %v679 = vunpack.c.l.b16 %v647
        %v680 = vpack.c.b16 %v665, %v664
        %v681 = vpack.c.b16 %v667, %v666
        %v682 = vpack.c.b16 %v669, %v668
        %v683 = vpack.c.b16 %v671, %v670
        %v684 = vpack.c.b16 %v673, %v672
        %v685 = vpack.c.b16 %v675, %v674
        %v686 = vpack.c.b16 %v677, %v676
        %v687 = vpack.c.b16 %v679, %v678
        %696 = vmatprep.subr.bf16.mxu0 0
        %697 = vmatpush1.bf16.msra.mxu0 %v680
        %698 = vmatprep.subr.bf16.mxu0 0
        %699 = vmatpush1.bf16.msra.mxu0 %v681
        %700 = vmatprep.subr.bf16.mxu0 0
        %701 = vmatpush1.bf16.msra.mxu0 %v682
        %702 = vmatprep.subr.bf16.mxu0 0
        %703 = vmatpush1.bf16.msra.mxu0 %v683
        %704 = vmatprep.subr.bf16.mxu0 0
        %705 = vmatpush1.bf16.msra.mxu0 %v684
        %706 = vmatprep.subr.bf16.mxu0 0
        %707 = vmatpush1.bf16.msra.mxu0 %v685
        %708 = vmatprep.subr.bf16.mxu0 0
        %709 = vmatpush1.bf16.msra.mxu0 %v686
        %710 = vmatprep.subr.bf16.mxu0 0
        %711 = vmatpush1.bf16.msra.mxu0 %v687
        %712 = vmatprep.subr.bf16.mxu0 0
        %713 = vmatpush1.bf16.msra.mxu0 0
        %714 = vmatprep.subr.bf16.mxu0 0
        %715 = vmatpush1.bf16.msra.mxu0 0
        %716 = vmatprep.subr.bf16.mxu0 0
        %717 = vmatpush1.bf16.msra.mxu0 0
        %718 = vmatprep.subr.bf16.mxu0 0
        %719 = vmatpush1.bf16.msra.mxu0 0
        %720 = vmatprep.subr.bf16.mxu0 0
        %721 = vmatpush1.bf16.msra.mxu0 0
        %722 = vmatprep.subr.bf16.mxu0 0
        %723 = vmatpush1.bf16.msra.mxu0 0
        %724 = vmatprep.subr.bf16.mxu0 0
        %725 = vmatpush1.bf16.msra.mxu0 0
        %726 = vmatprep.subr.bf16.mxu0 0
        %727 = vmatpush1.bf16.msra.mxu0 0
        %728 = vmatprep.mubr.bf16.mxu0 0
        %729 = vmatmul.mubr.bf16.gmra.mrb[0].mxu0 %v329
        %v730 = vpop.f32.mrb[0].mxu0
        %v731 = vadd.f32 0.0, %v730
        %v732 = vpop.f32.mrb[0].mxu0
        %v733 = vpop.f32.mrb[0].mxu0
        %v734 = vadd.f32 0.0, %v733
        %v735 = vpop.f32.mrb[0].mxu0
        %736 = vmatprep.mubr.bf16.mxu0 0
        %737 = vmatmul.mubr.bf16.gmra.mrb[0].mxu0 %v330
        %v738 = vpop.f32.mrb[0].mxu0
        %v739 = vadd.f32 0.0, %v738
        %v740 = vpop.f32.mrb[0].mxu0
        %v741 = vpop.f32.mrb[0].mxu0
        %v742 = vadd.f32 0.0, %v741
        %v743 = vpop.f32.mrb[0].mxu0
        %744 = vmatprep.mubr.bf16.mxu0 0
        %745 = vmatmul.mubr.bf16.gmra.mrb[0].mxu0 %v331
        %v746 = vpop.f32.mrb[0].mxu0
        %v747 = vadd.f32 0.0, %v746
        %v748 = vpop.f32.mrb[0].mxu0
        %v749 = vpop.f32.mrb[0].mxu0
        %v750 = vadd.f32 0.0, %v749
        %v751 = vpop.f32.mrb[0].mxu0
        %752 = vmatprep.mubr.bf16.mxu0 0
        %753 = vmatmul.mubr.bf16.gmra.mrb[0].mxu0 %v332
        %v754 = vpop.f32.mrb[0].mxu0
        %v755 = vadd.f32 0.0, %v754
        %v756 = vpop.f32.mrb[0].mxu0
        %v757 = vpop.f32.mrb[0].mxu0
        %v758 = vadd.f32 0.0, %v757
        %v759 = vpop.f32.mrb[0].mxu0
        %760 = vdwg.mxu0
        %v761 = vld [vmem:[#allocation2] sm:$0xff]
        %v762 = vld [vmem:[#allocation2 + $0x8] sm:$0xff]
        %v763 = vld [vmem:[#allocation2 + $0x10] sm:$0xff]
        %v764 = vld [vmem:[#allocation2 + $0x18] sm:$0xff]
        %v765 = vld [vmem:[#allocation2 + $0x20] sm:$0xff]
        %v766 = vld [vmem:[#allocation2 + $0x28] sm:$0xff]
        %v767 = vld [vmem:[#allocation2 + $0x30] sm:$0xff]
        %v768 = vld [vmem:[#allocation2 + $0x38] sm:$0xff]
        %v769 = vrot.slane %v731, 2
        %v770 = vrot.slane %v734, 2
        %v771 = vrot.slane %v739, 2
        %v772 = vrot.slane %v742, 2
        %v773 = vrot.slane %v747, 2
        %v774 = vrot.slane %v750, 2
        %v775 = vrot.slane %v755, 2
        %v776 = vrot.slane %v758, 2
        %vm777 = vcmp.lt.s32.totalorder %v605, 6
        %v778 = vsel %vm777, %v775, %v776
        %v779 = vsel %vm777, %v774, %v775
        %v780 = vsel %vm777, %v773, %v774
        %v781 = vsel %vm777, %v772, %v773
        %v782 = vsel %vm777, %v771, %v772
        %v783 = vsel %vm777, %v770, %v771
        %v784 = vsel %vm777, %v769, %v770
        %v785 = vsel %vm777, %v776, %v769
        %v786 = vadd.f32 %v761, %v784
        %v787 = vadd.f32 %v762, %v783
        %v788 = vadd.f32 %v763, %v782
        %v789 = vadd.f32 %v764, %v781
        %v790 = vadd.f32 %v765, %v780
        %v791 = vadd.f32 %v766, %v779
        %v792 = vadd.f32 %v767, %v778
        %v793 = vadd.f32 %v768, %v785
        %794 = vst [vmem:[#allocation2] sm:$0xff] %v786
        %795 = vst [vmem:[#allocation2 + $0x8] sm:$0xff] %v787
        %796 = vst [vmem:[#allocation2 + $0x10] sm:$0xff] %v788
        %797 = vst [vmem:[#allocation2 + $0x18] sm:$0xff] %v789
        %798 = vst [vmem:[#allocation2 + $0x20] sm:$0xff] %v790
        %799 = vst [vmem:[#allocation2 + $0x28] sm:$0xff] %v791
        %800 = vst [vmem:[#allocation2 + $0x30] sm:$0xff] %v792
        %801 = vst [vmem:[#allocation2 + $0x38] sm:$0xff] %v793
        %s802 = scalar_lea.vmem [#allocation7], 192
        %v803 = vld [vmem:[%s802] sm:$0xf]
        %v804 = vld [vmem:[%s802 + $0x4] sm:$0xf]
        %v805 = vld [vmem:[%s802 + $0x8] sm:$0xf]
        %v806 = vld [vmem:[%s802 + $0xc] sm:$0xf]
        %v807 = vld [vmem:[%s802 + $0x10] sm:$0xf]
        %v808 = vld [vmem:[%s802 + $0x14] sm:$0xf]
        %v809 = vld [vmem:[%s802 + $0x18] sm:$0xf]
        %v810 = vld [vmem:[%s802 + $0x1c] sm:$0xf]
        %v811 = vld [vmem:[%s802 + $0x20] sm:$0xf]
        %v812 = vld [vmem:[%s802 + $0x24] sm:$0xf]
        %v813 = vld [vmem:[%s802 + $0x28] sm:$0xf]
        %v814 = vld [vmem:[%s802 + $0x2c] sm:$0xf]
        %v815 = vld [vmem:[%s802 + $0x30] sm:$0xf]
        %v816 = vld [vmem:[%s802 + $0x34] sm:$0xf]
        %v817 = vld [vmem:[%s802 + $0x38] sm:$0xf]
        %v818 = vld [vmem:[%s802 + $0x3c] sm:$0xf]
        %v835 = vunpack.c.l.b16 %v803
        %v836 = vunpack.c.l.b16 %v804
        %v837 = vunpack.c.l.b16 %v805
        %v838 = vunpack.c.l.b16 %v806
        %v839 = vunpack.c.l.b16 %v807
        %v840 = vunpack.c.l.b16 %v808
        %v841 = vunpack.c.l.b16 %v809
        %v842 = vunpack.c.l.b16 %v810
        %v843 = vunpack.c.l.b16 %v811
        %v844 = vunpack.c.l.b16 %v812
        %v845 = vunpack.c.l.b16 %v813
        %v846 = vunpack.c.l.b16 %v814
        %v847 = vunpack.c.l.b16 %v815
        %v848 = vunpack.c.l.b16 %v816
        %v849 = vunpack.c.l.b16 %v817
        %v850 = vunpack.c.l.b16 %v818
        %v851 = vpack.c.b16 %v836, %v835
        %v852 = vpack.c.b16 %v838, %v837
        %v853 = vpack.c.b16 %v840, %v839
        %v854 = vpack.c.b16 %v842, %v841
        %v855 = vpack.c.b16 %v844, %v843
        %v856 = vpack.c.b16 %v846, %v845
        %v857 = vpack.c.b16 %v848, %v847
        %v858 = vpack.c.b16 %v850, %v849
        %867 = vmatprep.subr.bf16.mxu0 0
        %868 = vmatpush1.bf16.msra.mxu0 %v851
        %869 = vmatprep.subr.bf16.mxu0 0
        %870 = vmatpush1.bf16.msra.mxu0 %v852
        %871 = vmatprep.subr.bf16.mxu0 0
        %872 = vmatpush1.bf16.msra.mxu0 %v853
        %873 = vmatprep.subr.bf16.mxu0 0
        %874 = vmatpush1.bf16.msra.mxu0 %v854
        %875 = vmatprep.subr.bf16.mxu0 0
        %876 = vmatpush1.bf16.msra.mxu0 %v855
        %877 = vmatprep.subr.bf16.mxu0 0
        %878 = vmatpush1.bf16.msra.mxu0 %v856
        %879 = vmatprep.subr.bf16.mxu0 0
        %880 = vmatpush1.bf16.msra.mxu0 %v857
        %881 = vmatprep.subr.bf16.mxu0 0
        %882 = vmatpush1.bf16.msra.mxu0 %v858
        %883 = vmatprep.subr.bf16.mxu0 0
        %884 = vmatpush1.bf16.msra.mxu0 0
        %885 = vmatprep.subr.bf16.mxu0 0
        %886 = vmatpush1.bf16.msra.mxu0 0
        %887 = vmatprep.subr.bf16.mxu0 0
        %888 = vmatpush1.bf16.msra.mxu0 0
        %889 = vmatprep.subr.bf16.mxu0 0
        %890 = vmatpush1.bf16.msra.mxu0 0
        %891 = vmatprep.subr.bf16.mxu0 0
        %892 = vmatpush1.bf16.msra.mxu0 0
        %893 = vmatprep.subr.bf16.mxu0 0
        %894 = vmatpush1.bf16.msra.mxu0 0
        %895 = vmatprep.subr.bf16.mxu0 0
        %896 = vmatpush1.bf16.msra.mxu0 0
        %897 = vmatprep.subr.bf16.mxu0 0
        %898 = vmatpush1.bf16.msra.mxu0 0
        %899 = vmatprep.mubr.bf16.mxu0 0
        %900 = vmatmul.mubr.bf16.gmra.mrb[0].mxu0 %v329
        %v901 = vpop.f32.mrb[0].mxu0
        %v902 = vadd.f32 0.0, %v901
        %v903 = vpop.f32.mrb[0].mxu0
        %v904 = vpop.f32.mrb[0].mxu0
        %v905 = vadd.f32 0.0, %v904
        %v906 = vpop.f32.mrb[0].mxu0
        %907 = vmatprep.mubr.bf16.mxu0 0
        %908 = vmatmul.mubr.bf16.gmra.mrb[0].mxu0 %v330
        %v909 = vpop.f32.mrb[0].mxu0
        %v910 = vadd.f32 0.0, %v909
        %v911 = vpop.f32.mrb[0].mxu0
        %v912 = vpop.f32.mrb[0].mxu0
        %v913 = vadd.f32 0.0, %v912
        %v914 = vpop.f32.mrb[0].mxu0
        %915 = vmatprep.mubr.bf16.mxu0 0
        %916 = vmatmul.mubr.bf16.gmra.mrb[0].mxu0 %v331
        %v917 = vpop.f32.mrb[0].mxu0
        %v918 = vadd.f32 0.0, %v917
        %v919 = vpop.f32.mrb[0].mxu0
        %v920 = vpop.f32.mrb[0].mxu0
        %v921 = vadd.f32 0.0, %v920
        %v922 = vpop.f32.mrb[0].mxu0
        %923 = vmatprep.mubr.bf16.mxu0 0
        %924 = vmatmul.mubr.bf16.gmra.mrb[0].mxu0 %v332
        %v925 = vpop.f32.mrb[0].mxu0
        %v926 = vadd.f32 0.0, %v925
        %v927 = vpop.f32.mrb[0].mxu0
        %v928 = vpop.f32.mrb[0].mxu0
        %v929 = vadd.f32 0.0, %v928
        %v930 = vpop.f32.mrb[0].mxu0
        %931 = vdwg.mxu0
        %v932 = vld [vmem:[#allocation2] sm:$0xff]
        %v933 = vld [vmem:[#allocation2 + $0x8] sm:$0xff]
        %v934 = vld [vmem:[#allocation2 + $0x10] sm:$0xff]
        %v935 = vld [vmem:[#allocation2 + $0x18] sm:$0xff]
        %v936 = vld [vmem:[#allocation2 + $0x20] sm:$0xff]
        %v937 = vld [vmem:[#allocation2 + $0x28] sm:$0xff]
        %v938 = vld [vmem:[#allocation2 + $0x30] sm:$0xff]
        %v939 = vld [vmem:[#allocation2 + $0x38] sm:$0xff]
        %v940 = vrot.slane %v902, 3
        %v941 = vrot.slane %v905, 3
        %v942 = vrot.slane %v910, 3
        %v943 = vrot.slane %v913, 3
        %v944 = vrot.slane %v918, 3
        %v945 = vrot.slane %v921, 3
        %v946 = vrot.slane %v926, 3
        %v947 = vrot.slane %v929, 3
        %vm948 = vcmp.lt.s32.totalorder %v605, 5
        %v949 = vsel %vm948, %v946, %v947
        %v950 = vsel %vm948, %v945, %v946
        %v951 = vsel %vm948, %v944, %v945
        %v952 = vsel %vm948, %v943, %v944
        %v953 = vsel %vm948, %v942, %v943
        %v954 = vsel %vm948, %v941, %v942
        %v955 = vsel %vm948, %v940, %v941
        %v956 = vsel %vm948, %v947, %v940
        %v957 = vadd.f32 %v932, %v955
        %v958 = vadd.f32 %v933, %v954
        %v959 = vadd.f32 %v934, %v953
        %v960 = vadd.f32 %v935, %v952
        %v961 = vadd.f32 %v936, %v951
        %v962 = vadd.f32 %v937, %v950
        %v963 = vadd.f32 %v938, %v949
        %v964 = vadd.f32 %v939, %v956
        %965 = vst [vmem:[#allocation2] sm:$0xff] %v957
        %966 = vst [vmem:[#allocation2 + $0x8] sm:$0xff] %v958
        %967 = vst [vmem:[#allocation2 + $0x10] sm:$0xff] %v959
        %968 = vst [vmem:[#allocation2 + $0x18] sm:$0xff] %v960
        %969 = vst [vmem:[#allocation2 + $0x20] sm:$0xff] %v961
        %970 = vst [vmem:[#allocation2 + $0x28] sm:$0xff] %v962
        %971 = vst [vmem:[#allocation2 + $0x30] sm:$0xff] %v963
        %972 = vst [vmem:[#allocation2 + $0x38] sm:$0xff] %v964
        %s973 = scalar_lea.vmem [#allocation7], 256
        %v974 = vld [vmem:[%s973] sm:$0xf]
        %v975 = vld [vmem:[%s973 + $0x4] sm:$0xf]
        %v976 = vld [vmem:[%s973 + $0x8] sm:$0xf]
        %v977 = vld [vmem:[%s973 + $0xc] sm:$0xf]
        %v978 = vld [vmem:[%s973 + $0x10] sm:$0xf]
        %v979 = vld [vmem:[%s973 + $0x14] sm:$0xf]
        %v980 = vld [vmem:[%s973 + $0x18] sm:$0xf]
        %v981 = vld [vmem:[%s973 + $0x1c] sm:$0xf]
        %v982 = vld [vmem:[%s973 + $0x20] sm:$0xf]
        %v983 = vld [vmem:[%s973 + $0x24] sm:$0xf]
        %v984 = vld [vmem:[%s973 + $0x28] sm:$0xf]
        %v985 = vld [vmem:[%s973 + $0x2c] sm:$0xf]
        %v986 = vld [vmem:[%s973 + $0x30] sm:$0xf]
        %v987 = vld [vmem:[%s973 + $0x34] sm:$0xf]
        %v988 = vld [vmem:[%s973 + $0x38] sm:$0xf]
        %v989 = vld [vmem:[%s973 + $0x3c] sm:$0xf]
        %v1006 = vunpack.c.l.b16 %v974
        %v1007 = vunpack.c.l.b16 %v975
        %v1008 = vunpack.c.l.b16 %v976
        %v1009 = vunpack.c.l.b16 %v977
        %v1010 = vunpack.c.l.b16 %v978
        %v1011 = vunpack.c.l.b16 %v979
        %v1012 = vunpack.c.l.b16 %v980
        %v1013 = vunpack.c.l.b16 %v981
        %v1014 = vunpack.c.l.b16 %v982
        %v1015 = vunpack.c.l.b16 %v983
        %v1016 = vunpack.c.l.b16 %v984
        %v1017 = vunpack.c.l.b16 %v985
        %v1018 = vunpack.c.l.b16 %v986
        %v1019 = vunpack.c.l.b16 %v987
        %v1020 = vunpack.c.l.b16 %v988
        %v1021 = vunpack.c.l.b16 %v989
        %v1022 = vpack.c.b16 %v1007, %v1006
        %v1023 = vpack.c.b16 %v1009, %v1008
        %v1024 = vpack.c.b16 %v1011, %v1010
        %v1025 = vpack.c.b16 %v1013, %v1012
        %v1026 = vpack.c.b16 %v1015, %v1014
        %v1027 = vpack.c.b16 %v1017, %v1016
        %v1028 = vpack.c.b16 %v1019, %v1018
        %v1029 = vpack.c.b16 %v1021, %v1020
        %1038 = vmatprep.subr.bf16.mxu0 0
        %1039 = vmatpush1.bf16.msra.mxu0 %v1022
        %1040 = vmatprep.subr.bf16.mxu0 0
        %1041 = vmatpush1.bf16.msra.mxu0 %v1023
        %1042 = vmatprep.subr.bf16.mxu0 0
        %1043 = vmatpush1.bf16.msra.mxu0 %v1024
        %1044 = vmatprep.subr.bf16.mxu0 0
        %1045 = vmatpush1.bf16.msra.mxu0 %v1025
        %1046 = vmatprep.subr.bf16.mxu0 0
        %1047 = vmatpush1.bf16.msra.mxu0 %v1026
        %1048 = vmatprep.subr.bf16.mxu0 0
        %1049 = vmatpush1.bf16.msra.mxu0 %v1027
        %1050 = vmatprep.subr.bf16.mxu0 0
        %1051 = vmatpush1.bf16.msra.mxu0 %v1028
        %1052 = vmatprep.subr.bf16.mxu0 0
        %1053 = vmatpush1.bf16.msra.mxu0 %v1029
        %1054 = vmatprep.subr.bf16.mxu0 0
        %1055 = vmatpush1.bf16.msra.mxu0 0
        %1056 = vmatprep.subr.bf16.mxu0 0
        %1057 = vmatpush1.bf16.msra.mxu0 0
        %1058 = vmatprep.subr.bf16.mxu0 0
        %1059 = vmatpush1.bf16.msra.mxu0 0
        %1060 = vmatprep.subr.bf16.mxu0 0
        %1061 = vmatpush1.bf16.msra.mxu0 0
        %1062 = vmatprep.subr.bf16.mxu0 0
        %1063 = vmatpush1.bf16.msra.mxu0 0
        %1064 = vmatprep.subr.bf16.mxu0 0
        %1065 = vmatpush1.bf16.msra.mxu0 0
        %1066 = vmatprep.subr.bf16.mxu0 0
        %1067 = vmatpush1.bf16.msra.mxu0 0
        %1068 = vmatprep.subr.bf16.mxu0 0
        %1069 = vmatpush1.bf16.msra.mxu0 0
        %1070 = vmatprep.mubr.bf16.mxu0 0
        %1071 = vmatmul.mubr.bf16.gmra.mrb[0].mxu0 %v329
        %v1072 = vpop.f32.mrb[0].mxu0
        %v1073 = vadd.f32 0.0, %v1072
        %v1074 = vpop.f32.mrb[0].mxu0
        %v1075 = vpop.f32.mrb[0].mxu0
        %v1076 = vadd.f32 0.0, %v1075
        %v1077 = vpop.f32.mrb[0].mxu0
        %1078 = vmatprep.mubr.bf16.mxu0 0
        %1079 = vmatmul.mubr.bf16.gmra.mrb[0].mxu0 %v330
        %v1080 = vpop.f32.mrb[0].mxu0
        %v1081 = vadd.f32 0.0, %v1080
        %v1082 = vpop.f32.mrb[0].mxu0
        %v1083 = vpop.f32.mrb[0].mxu0
        %v1084 = vadd.f32 0.0, %v1083
        %v1085 = vpop.f32.mrb[0].mxu0
        %1086 = vmatprep.mubr.bf16.mxu0 0
        %1087 = vmatmul.mubr.bf16.gmra.mrb[0].mxu0 %v331
        %v1088 = vpop.f32.mrb[0].mxu0
        %v1089 = vadd.f32 0.0, %v1088
        %v1090 = vpop.f32.mrb[0].mxu0
        %v1091 = vpop.f32.mrb[0].mxu0
        %v1092 = vadd.f32 0.0, %v1091
        %v1093 = vpop.f32.mrb[0].mxu0
        %1094 = vmatprep.mubr.bf16.mxu0 0
        %1095 = vmatmul.mubr.bf16.gmra.mrb[0].mxu0 %v332
        %v1096 = vpop.f32.mrb[0].mxu0
        %v1097 = vadd.f32 0.0, %v1096
        %v1098 = vpop.f32.mrb[0].mxu0
        %v1099 = vpop.f32.mrb[0].mxu0
        %v1100 = vadd.f32 0.0, %v1099
        %v1101 = vpop.f32.mrb[0].mxu0
        %1102 = vdwg.mxu0
        %v1103 = vld [vmem:[#allocation2] sm:$0xff]
        %v1104 = vld [vmem:[#allocation2 + $0x8] sm:$0xff]
        %v1105 = vld [vmem:[#allocation2 + $0x10] sm:$0xff]
        %v1106 = vld [vmem:[#allocation2 + $0x18] sm:$0xff]
        %v1107 = vld [vmem:[#allocation2 + $0x20] sm:$0xff]
        %v1108 = vld [vmem:[#allocation2 + $0x28] sm:$0xff]
        %v1109 = vld [vmem:[#allocation2 + $0x30] sm:$0xff]
        %v1110 = vld [vmem:[#allocation2 + $0x38] sm:$0xff]
        %v1111 = vrot.slane %v1073, 4
        %v1112 = vrot.slane %v1076, 4
        %v1113 = vrot.slane %v1081, 4
        %v1114 = vrot.slane %v1084, 4
        %v1115 = vrot.slane %v1089, 4
        %v1116 = vrot.slane %v1092, 4
        %v1117 = vrot.slane %v1097, 4
        %v1118 = vrot.slane %v1100, 4
        %vm1119 = vcmp.lt.s32.totalorder %v605, 4
        %v1120 = vsel %vm1119, %v1117, %v1118
        %v1121 = vsel %vm1119, %v1116, %v1117
        %v1122 = vsel %vm1119, %v1115, %v1116
        %v1123 = vsel %vm1119, %v1114, %v1115
        %v1124 = vsel %vm1119, %v1113, %v1114
        %v1125 = vsel %vm1119, %v1112, %v1113
        %v1126 = vsel %vm1119, %v1111, %v1112
        %v1127 = vsel %vm1119, %v1118, %v1111
        %v1128 = vadd.f32 %v1103, %v1126
        %v1129 = vadd.f32 %v1104, %v1125
        %v1130 = vadd.f32 %v1105, %v1124
        %v1131 = vadd.f32 %v1106, %v1123
        %v1132 = vadd.f32 %v1107, %v1122
        %v1133 = vadd.f32 %v1108, %v1121
        %v1134 = vadd.f32 %v1109, %v1120
        %v1135 = vadd.f32 %v1110, %v1127
        %1136 = vst [vmem:[#allocation2] sm:$0xff] %v1128
        %1137 = vst [vmem:[#allocation2 + $0x8] sm:$0xff] %v1129
        %1138 = vst [vmem:[#allocation2 + $0x10] sm:$0xff] %v1130
        %1139 = vst [vmem:[#allocation2 + $0x18] sm:$0xff] %v1131
        %1140 = vst [vmem:[#allocation2 + $0x20] sm:$0xff] %v1132
        %1141 = vst [vmem:[#allocation2 + $0x28] sm:$0xff] %v1133
        %1142 = vst [vmem:[#allocation2 + $0x30] sm:$0xff] %v1134
        %1143 = vst [vmem:[#allocation2 + $0x38] sm:$0xff] %v1135
        %v1144 = vld [vmem:[#allocation2] sm:$0xff]
        %v1145 = vld [vmem:[#allocation2 + $0x8] sm:$0xff]
        %v1146 = vld [vmem:[#allocation2 + $0x10] sm:$0xff]
        %v1147 = vld [vmem:[#allocation2 + $0x18] sm:$0xff]
        %v1148 = vld [vmem:[#allocation2 + $0x20] sm:$0xff]
        %v1149 = vld [vmem:[#allocation2 + $0x28] sm:$0xff]
        %v1150 = vld [vmem:[#allocation2 + $0x30] sm:$0xff]
        %v1151 = vld [vmem:[#allocation2 + $0x38] sm:$0xff]
        %v1152 = vld [vmem:[%s2] sm:$0x1]
        %v1154 = vlaneseq
        %v1155 = vshrl.u32 %v1154, 7
        %v1156 = vsub.s32 0, %v1155
        %v1157 = vrot.slane %v1152, %v1156
        %v1159 = vadd.f32 %v1144, %v1157
        %v1160 = vadd.f32 %v1145, %v1157
        %v1161 = vadd.f32 %v1146, %v1157
        %v1162 = vadd.f32 %v1147, %v1157
        %v1163 = vadd.f32 %v1148, %v1157
        %v1164 = vadd.f32 %v1149, %v1157
        %v1165 = vadd.f32 %v1150, %v1157
        %v1166 = vadd.f32 %v1151, %v1157
        %v1167 = vmax.f32 %v1159, 0.0
        %v1168 = vmax.f32 %v1160, 0.0
        %v1169 = vmax.f32 %v1161, 0.0
        %v1170 = vmax.f32 %v1162, 0.0
        %v1171 = vmax.f32 %v1163, 0.0
        %v1172 = vmax.f32 %v1164, 0.0
        %v1173 = vmax.f32 %v1165, 0.0
        %v1174 = vmax.f32 %v1166, 0.0
        %v1175 = vld [vmem:[%s3] sm:$0xff]
        %v1176 = vmul.f32 %v1167, %v1175
        %v1177 = vmul.f32 %v1168, %v1175
        %v1178 = vmul.f32 %v1169, %v1175
        %v1179 = vmul.f32 %v1170, %v1175
        %v1180 = vmul.f32 %v1171, %v1175
        %v1181 = vmul.f32 %v1172, %v1175
        %v1182 = vmul.f32 %v1173, %v1175
        %v1183 = vmul.f32 %v1174, %v1175
        %v1184 = vrot.slane %v1176, 4
        %v1185 = vmax.f32 %v1176, %v1184
        %v1186 = vrot.slane %v1185, 2
        %v1187 = vmax.f32 %v1185, %v1186
        %v1188 = vrot.slane %v1187, 1
        %v1189 = vmax.f32 %v1187, %v1188
        %v1190 = vrot.slane %v1177, 4
        %v1191 = vmax.f32 %v1177, %v1190
        %v1192 = vrot.slane %v1191, 2
        %v1193 = vmax.f32 %v1191, %v1192
        %v1194 = vrot.slane %v1193, 1
        %v1195 = vmax.f32 %v1193, %v1194
        %v1196 = vrot.slane %v1178, 4
        %v1197 = vmax.f32 %v1178, %v1196
        %v1198 = vrot.slane %v1197, 2
        %v1199 = vmax.f32 %v1197, %v1198
        %v1200 = vrot.slane %v1199, 1
        %v1201 = vmax.f32 %v1199, %v1200
        %v1202 = vrot.slane %v1179, 4
        %v1203 = vmax.f32 %v1179, %v1202
        %v1204 = vrot.slane %v1203, 2
        %v1205 = vmax.f32 %v1203, %v1204
        %v1206 = vrot.slane %v1205, 1
        %v1207 = vmax.f32 %v1205, %v1206
        %v1208 = vrot.slane %v1180, 4
        %v1209 = vmax.f32 %v1180, %v1208
        %v1210 = vrot.slane %v1209, 2
        %v1211 = vmax.f32 %v1209, %v1210
        %v1212 = vrot.slane %v1211, 1
        %v1213 = vmax.f32 %v1211, %v1212
        %v1214 = vrot.slane %v1181, 4
        %v1215 = vmax.f32 %v1181, %v1214
        %v1216 = vrot.slane %v1215, 2
        %v1217 = vmax.f32 %v1215, %v1216
        %v1218 = vrot.slane %v1217, 1
        %v1219 = vmax.f32 %v1217, %v1218
        %v1220 = vrot.slane %v1182, 4
        %v1221 = vmax.f32 %v1182, %v1220
        %v1222 = vrot.slane %v1221, 2
        %v1223 = vmax.f32 %v1221, %v1222
        %v1224 = vrot.slane %v1223, 1
        %v1225 = vmax.f32 %v1223, %v1224
        %v1226 = vrot.slane %v1183, 4
        %v1227 = vmax.f32 %v1183, %v1226
        %v1228 = vrot.slane %v1227, 2
        %v1229 = vmax.f32 %v1227, %v1228
        %v1230 = vrot.slane %v1229, 1
        %v1231 = vmax.f32 %v1229, %v1230
        %v1232 = vld [vmem:[%s4] sm:$0x1]
        %v1234 = vlaneseq
        %v1235 = vshrl.u32 %v1234, 7
        %v1236 = vsub.s32 0, %v1235
        %v1237 = vrot.slane %v1232, %v1236
        %v1239 = vmul.f32 %v1189, %v1237
        %v1240 = vmul.f32 %v1195, %v1237
        %v1241 = vmul.f32 %v1201, %v1237
        %v1242 = vmul.f32 %v1207, %v1237
        %v1243 = vmul.f32 %v1213, %v1237
        %v1244 = vmul.f32 %v1219, %v1237
        %v1245 = vmul.f32 %v1225, %v1237
        %v1246 = vmul.f32 %v1231, %v1237
        %v1255 = vrot.slane %v1240, 7
        %vm1256 = vcmask 1041409
        %v1257 = vsel %vm1256, %v1255, %v1239
        %v1258 = vrot.slane %v1241, 6
        %vm1259 = vcmask 1042434
        %v1260 = vsel %vm1259, %v1258, %v1257
        %v1261 = vrot.slane %v1242, 5
        %vm1262 = vcmask 1043459
        %v1263 = vsel %vm1262, %v1261, %v1260
        %v1264 = vrot.slane %v1243, 4
        %vm1265 = vcmask 1044484
        %v1266 = vsel %vm1265, %v1264, %v1263
        %v1267 = vrot.slane %v1244, 3
        %vm1268 = vcmask 1045509
        %v1269 = vsel %vm1268, %v1267, %v1266
        %v1270 = vrot.slane %v1245, 2
        %vm1271 = vcmask 1046534
        %v1272 = vsel %vm1271, %v1270, %v1269
        %v1273 = vrot.slane %v1246, 1
        %vm1274 = vcmask 1047559
        %v1275 = vsel %vm1274, %v1273, %v1272
        %1277 = vadd.xlane.f32.xlu0 %v1275
        %v1278 = vpop.xlane.xlu0 %1277
        %v1279 = vld [vmem:[#allocation3] sm:$0x1]
        %v1281 = vlaneseq
        %v1282 = vshrl.u32 %v1281, 7
        %v1283 = vsub.s32 0, %v1282
        %v1284 = vrot.slane %v1279, %v1283
        %v1286 = vadd.f32 %v1278, %v1284
        %1288 = vset.pattern.permute.xlu0 0
        %1289 = vperm.xlu0 %1288, %v1286
        %v1290 = vpop.permute.xlu0 %1289
        %1292 = vst [vmem:[%s286] sm:$0xff] %v1290
        %s1293 = sand.u32 %s165, 1
        %s1294 = scalar_lea.sflag [#allocation6], %s1293
        %s1295 = sand.u32 %s165, 1
        %s1296 = smul.addr %s1295, 8
        %s1297 = scalar_lea.vmem [#allocation9], %s1296
        // Predicated region
        $region53: #{tpu_custom_call.1} parent=43 // pred_check
          %p1298 = pneg %p175
        $region54: #{tpu_custom_call.1} parent=43 // pred_check_branch
          %1300 = sbr.rel (%p1298) target = $region56
        $region55: #{tpu_custom_call.1} parent=43 // pred_region
          %s1302 = ssub.s32 128, 128
          %1303 = vsyncadd %s1294, %s1302
          %s1304 = smul.addr %s26, 128
          %s1305 = scalar_lea.hbm %s6, %s1304
          %s1307 = sshll.u32 %s1297, 4
          %s1308 = int_to_ptr.vmem [resolvable:$true] %s1307
          %1310 = dma.vmem_to_hbm [thread:$0]  %s1308, 128, %s1305, %s1294
        $region56: #{tpu_custom_call.1} parent=43 // pred_fallthru
          _
      $region44: #{tpu_custom_call.1} parent=5 // pred_fallthru
        _
      %p1311 = scmp.le.s32.totalorder 2, %s21
      // Predicated region
      $region57: #{tpu_custom_call.1} parent=5 // pred_check
        %p1312 = pneg %p1311
      $region58: #{tpu_custom_call.1} parent=5 // pred_check_branch
        %1314 = sbr.rel (%p1312) target = $region60
      $region59: #{tpu_custom_call.1} parent=5 // pred_region
        %s1315 = ssub.s32 %s21, 2
        // Predicated region
        $region61: #{tpu_custom_call.1} parent=59 // pred_check
          %p1316 = pneg %p181
        $region62: #{tpu_custom_call.1} parent=59 // pred_check_branch
          %1318 = sbr.rel (%p1316) target = $region64
        $region63: #{tpu_custom_call.1} parent=59 // pred_region
          %s1319 = sand.u32 %s166, 1
          %s1320 = scalar_lea.sflag [#allocation6], %s1319
          %s1321 = sand.u32 %s166, 1
          %s1322 = smul.addr %s1321, 8
          %s1323 = scalar_lea.vmem [#allocation9], %s1322
          %1324 = dma.done %s1320, 128
        $region64: #{tpu_custom_call.1} parent=59 // pred_fallthru
          _
      $region60: #{tpu_custom_call.1} parent=5 // pred_fallthru
        _
    $region6: #{tpu_custom_call.1} parent=1 // loop_footer
      %s25 = sadd.s32 1, %s21
    $region7: #{tpu_custom_call.1} parent=1 // loop_footer_branch
      %20 = sbr.rel target = $region3
    $region8: #{tpu_custom_call.1} parent=1 // loop_exit
      _
    %1325 = vsyncpa [#allocation5], 1
    %s1326 = scalar_lea.sflag [#allocation5], 1
    %1327 = vsyncpa %s1326, 1
    %1328 = vsyncpa [#allocation8], 1
    %1329 = vsyncpa [#allocation6], 1
    %s1330 = scalar_lea.sflag [#allocation6], 1
    %1331 = vsyncpa %s1330, 1

</llo_original>
